<compile_context>
chip_gen: v5e
topology: v5e:2x2
jax: 0.10.0
libtpu: 0.0.40
codegen_flags: <defaults>
</compile_context>

<pallas_src>
import functools

import jax
import jax.numpy as jnp
from jax import lax
from jax.experimental import pallas as pl
from jax.experimental.pallas import tpu as pltpu


def _head_kernel(x_ref, w1_ref, b1_ref, wd_ref, bd_ref, o_ref):
    # x_ref : (TB, K)  f32   batch tile of flattened backbone features
    # w1_ref: (K, 128) f32   fc1 weight (transposed); resident across grid steps
    # b1_ref: (1, 128) f32   fc1 bias; resident
    # wd_ref: (1, 128) f32   fc2 delta row (W2[0] - W2[1]); lane-dense, resident
    # bd_ref: (1, 1)   f32   fc2 delta bias (b2[0] - b2[1]); SMEM scalar
    # o_ref : (2, TB)  f32   lane-dense log-probs (row 0 = class 0, row 1 = class 1)
    x = x_ref[...]

    # fc1 on the MXU (f32 accumulation) + LeakyReLU(0.01) on the VPU.
    h = jnp.dot(x, w1_ref[...], preferred_element_type=jnp.float32) + b1_ref[...]
    h = jnp.where(h > 0.0, h, 0.01 * h)                              # (TB, 128)

    # 2-class logit delta d = l0 - l1, computed lane-dense as (1, TB): contract the
    # last dims of (1,128) and (TB,128) — same pattern as q.k^T, so no explicit
    # transpose of h is materialized.
    d = lax.dot_general(wd_ref[...], h,
                        dimension_numbers=(((1,), (1,)), ((), ())),
                        preferred_element_type=jnp.float32)          # (1, TB)
    d = d + bd_ref[0, 0]

    # Numerically stable softplus(d) = max(d, 0) + log1p(exp(-|d|))  (VPU + EUP only).
    s = jnp.maximum(d, 0.0) + jnp.log1p(jnp.exp(-jnp.abs(d)))        # (1, TB)

    # log_softmax([l0, l1]) = [d - softplus(d), -softplus(d)].
    # Row selector built with broadcasted_iota (no captured array constants); single
    # unmasked full-block store.
    row = lax.broadcasted_iota(jnp.int32, o_ref.shape, 0)            # 0 on row0, 1 on row1
    out = jnp.where(row == 0, d - s, -s)                             # (2, TB)
    o_ref[...] = out.astype(o_ref.dtype)


@functools.partial(jax.jit, static_argnames=("tile_b",))
def densenet_head_forward(x, fc1_w, fc1_b, fc2_w, fc2_b, *, tile_b=256):
    """fc1 (K->128) + LeakyReLU(0.01) + fc2 (128->2) + LogSoftmax(dim=1).

    x:     (B, K)   f32 flattened backbone features (K = 152*2*16 = 4864)
    fc1_w: (128, K) f32, fc1_b: (128,) f32   (nn.Linear layout)
    fc2_w: (2, 128) f32, fc2_b: (2,)   f32
    Returns (B, 2) f32 log-probabilities.
    """
    B, K = x.shape
    H, k_in = fc1_w.shape
    n_cls, h_in = fc2_w.shape
    assert k_in == K and h_in == H
    assert n_cls == 2, "closed-form head kernel assumes num_classes == 2"
    assert H % 128 == 0, "fc1 width must be lane-aligned"

    # Small resident operands (in a real model these would be pre-transposed once).
    w1_t = jnp.asarray(fc1_w, jnp.float32).T                             # (K, H)
    b1_r = jnp.asarray(fc1_b, jnp.float32).reshape(1, H)                 # (1, H)
    w_delta = (fc2_w[0] - fc2_w[1]).reshape(1, H).astype(jnp.float32)    # (1, H) lane-dense
    b_delta = (fc2_b[0] - fc2_b[1]).reshape(1, 1).astype(jnp.float32)    # (1, 1) SMEM scalar

    # Batch tile: full batch if it fits, else a multiple of 128 rows (keeps the x block
    # sublane-aligned and the lane-dense output block a multiple of 128 lanes).
    # No jnp.pad: Pallas handles the ragged final block (reads padded, OOB writes dropped).
    tb = min(int(tile_b), B)
    if tb < B:
        tb = max(128, (tb // 128) * 128)
        tb = min(tb, B)
    grid = (pl.cdiv(B, tb),)

    out_t = pl.pallas_call(
        _head_kernel,
        out_shape=jax.ShapeDtypeStruct((2, B), jnp.float32),
        grid_spec=pltpu.PrefetchScalarGridSpec(
            num_scalar_prefetch=0,
            grid=grid,
            in_specs=[
                pl.BlockSpec((tb, K), lambda i: (i, 0)),      # x: tiled over batch
                pl.BlockSpec((K, H), lambda i: (0, 0)),       # fc1 weight: resident
                pl.BlockSpec((1, H), lambda i: (0, 0)),       # fc1 bias: resident
                pl.BlockSpec((1, H), lambda i: (0, 0)),       # fc2 delta row: resident
                pl.BlockSpec(memory_space=pltpu.MemorySpace.SMEM),  # fc2 delta bias
            ],
            out_specs=pl.BlockSpec((2, tb), lambda i: (0, i)),  # lane-dense output block
        ),
        compiler_params=pltpu.CompilerParams(
            dimension_semantics=("parallel",),     # batch tiles are independent
            vmem_limit_bytes=48 * 1024 * 1024,
        ),
    )(x, w1_t, b1_r, w_delta, b_delta)

    # Cheap final transpose back to the PyTorch (B, num_classes) layout.
    return out_t.T


def _reference(x, fc1_w, fc1_b, fc2_w, fc2_b):
    h = x @ fc1_w.T + fc1_b
    h = jnp.where(h > 0, h, 0.01 * h)
    logits = h @ fc2_w.T + fc2_b
    return jax.nn.log_softmax(logits, axis=1)


if __name__ == "__main__":
    key = jax.random.PRNGKey(0)
    kx, kw1, kb1, kw2, kb2, kx2 = jax.random.split(key, 6)

    K = 152 * 2 * 16          # fc1 in_features from the module (= 4864)
    H, OUT = 128, 2
    B = 8

    x = jax.random.normal(kx, (B, K), dtype=jnp.float32)

    # Deterministic PyTorch-style init: uniform(-1/sqrt(fan_in), 1/sqrt(fan_in)).
    bound1 = 1.0 / float(K) ** 0.5
    fc1_w = jax.random.uniform(kw1, (H, K), jnp.float32, -bound1, bound1)
    fc1_b = jax.random.uniform(kb1, (H,), jnp.float32, -bound1, bound1)
    bound2 = 1.0 / float(H) ** 0.5
    fc2_w = jax.random.uniform(kw2, (OUT, H), jnp.float32, -bound2, bound2)
    fc2_b = jax.random.uniform(kb2, (OUT,), jnp.float32, -bound2, bound2)

    # Single-tile path (B <= tile -> one full-batch block).
    out = jax.block_until_ready(densenet_head_forward(x, fc1_w, fc1_b, fc2_w, fc2_b))
    ref = _reference(x, fc1_w, fc1_b, fc2_w, fc2_b)
    assert out.shape == (B, OUT)
    # Tolerance covers MXU default-precision f32 matmul differences vs the XLA reference.
    assert jnp.allclose(out, ref, atol=2e-2, rtol=2e-2), float(jnp.max(jnp.abs(out - ref)))

    # Multi-tile path with a ragged final block (exercises tiling, weight residency,
    # and OOB-row masking on the output write).
    B2 = 264
    x2 = jax.random.normal(kx2, (B2, K), dtype=jnp.float32)
    out2 = jax.block_until_ready(
        densenet_head_forward(x2, fc1_w, fc1_b, fc2_w, fc2_b, tile_b=128))
    ref2 = _reference(x2, fc1_w, fc1_b, fc2_w, fc2_b)
    assert out2.shape == (B2, OUT)
    assert jnp.allclose(out2, ref2, atol=2e-2, rtol=2e-2), float(jnp.max(jnp.abs(out2 - ref2)))

    print("KERNEL_OK")
</pallas_src>

<mosaic_0001>
module attributes {stable_mosaic.version = 11 : i64} {
  func.func @_head_kernel(%arg0: i32, %arg1: memref<8x4864xf32, #tpu.memory_space<vmem>>, %arg2: memref<4864x128xf32, #tpu.memory_space<vmem>>, %arg3: memref<1x128xf32, #tpu.memory_space<vmem>>, %arg4: memref<1x128xf32, #tpu.memory_space<vmem>>, %arg5: memref<1x1xf32, #tpu.memory_space<smem>>, %arg6: memref<2x8xf32, #tpu.memory_space<vmem>>) attributes {dimension_semantics = [#tpu.dimension_semantics<parallel>], iteration_bounds = array<i64: 1>, scalar_prefetch = 0 : i64, scratch_operands = 0 : i64, tpu.core_type = #tpu.core_type<tc>, window_params = [{transform_indices = @transform_0, window_bounds = array<i64: 8, 4864>}, {pipeline_mode = #tpu.pipeline_mode<synchronous>, transform_indices = @transform_1, window_bounds = array<i64: 4864, 128>}, {pipeline_mode = #tpu.pipeline_mode<synchronous>, transform_indices = @transform_2, window_bounds = array<i64: 1, 128>}, {pipeline_mode = #tpu.pipeline_mode<synchronous>, transform_indices = @transform_3, window_bounds = array<i64: 1, 128>}, {transform_indices = @transform_4, window_bounds = array<i64: 1, 1>}, {transform_indices = @transform_5, window_bounds = array<i64: 2, 8>}]} {
    %c0 = arith.constant 0 : index
    %c0_0 = arith.constant 0 : index
    %0 = vector.load %arg1[%c0, %c0_0] : memref<8x4864xf32, #tpu.memory_space<vmem>>, vector<8x4864xf32>
    %c0_1 = arith.constant 0 : index
    %c0_2 = arith.constant 0 : index
    %1 = vector.load %arg2[%c0_1, %c0_2] : memref<4864x128xf32, #tpu.memory_space<vmem>>, vector<4864x128xf32>
    %cst = arith.constant dense<0.000000e+00> : vector<8x128xf32>
    %2 = tpu.matmul %0, %1, %cst {dimension_numbers = #tpu.dot_dimension_numbers<[1], [0], [0], [1], [0, 0, 1, 1], [], []>} : vector<8x4864xf32>, vector<4864x128xf32>, vector<8x128xf32> -> vector<8x128xf32>
    %c0_3 = arith.constant 0 : index
    %c0_4 = arith.constant 0 : index
    %3 = vector.load %arg3[%c0_3, %c0_4] : memref<1x128xf32, #tpu.memory_space<vmem>>, vector<1x128xf32>
    %4 = vector.broadcast %3 : vector<1x128xf32> to vector<8x128xf32>
    %5 = arith.addf %2, %4 : vector<8x128xf32>
    %cst_5 = arith.constant 0.000000e+00 : f32
    %6 = vector.broadcast %cst_5 : f32 to vector<8x128xf32>
    %7 = arith.cmpf ogt, %5, %6 : vector<8x128xf32>
    %cst_6 = arith.constant 0.00999999977 : f32
    %8 = vector.broadcast %cst_6 : f32 to vector<8x128xf32>
    %9 = arith.mulf %8, %5 : vector<8x128xf32>
    %10 = arith.select %7, %5, %9 : vector<8x128xi1>, vector<8x128xf32>
    %c0_7 = arith.constant 0 : index
    %c0_8 = arith.constant 0 : index
    %11 = vector.load %arg4[%c0_7, %c0_8] : memref<1x128xf32, #tpu.memory_space<vmem>>, vector<1x128xf32>
    %cst_9 = arith.constant dense<0.000000e+00> : vector<1x8xf32>
    %12 = tpu.matmul %11, %10, %cst_9 {dimension_numbers = #tpu.dot_dimension_numbers<[1], [1], [0], [0], [0, 0, 1, 0], [], []>} : vector<1x128xf32>, vector<8x128xf32>, vector<1x8xf32> -> vector<1x8xf32>
    %c0_10 = arith.constant 0 : index
    %c0_11 = arith.constant 0 : index
    %13 = memref.load %arg5[%c0_10, %c0_11] : memref<1x1xf32, #tpu.memory_space<smem>>
    %14 = vector.broadcast %13 : f32 to vector<1x8xf32>
    %15 = arith.addf %12, %14 : vector<1x8xf32>
    %cst_12 = arith.constant 0.000000e+00 : f32
    %16 = vector.broadcast %cst_12 : f32 to vector<1x8xf32>
    %17 = arith.maximumf %15, %16 : vector<1x8xf32>
    %18 = math.absf %15 : vector<1x8xf32>
    %cst_13 = arith.constant 0.000000e+00 : f32
    %19 = vector.broadcast %cst_13 : f32 to vector<1x8xf32>
    %20 = arith.subf %19, %18 : vector<1x8xf32>
    %21 = math.exp %20 : vector<1x8xf32>
    %22 = math.log1p %21 : vector<1x8xf32>
    %23 = arith.addf %17, %22 : vector<1x8xf32>
    %24 = tpu.iota {dimensions = array<i32: 0>} : vector<2x8xi32>
    %c0_i32 = arith.constant 0 : i32
    %25 = vector.broadcast %c0_i32 : i32 to vector<2x8xi32>
    %26 = arith.cmpi eq, %24, %25 : vector<2x8xi32>
    %27 = arith.subf %15, %23 : vector<1x8xf32>
    %cst_14 = arith.constant 0.000000e+00 : f32
    %28 = vector.broadcast %cst_14 : f32 to vector<1x8xf32>
    %29 = arith.subf %28, %23 : vector<1x8xf32>
    %30 = vector.shape_cast %27 : vector<1x8xf32> to vector<1x8xf32>
    %31 = vector.broadcast %30 : vector<1x8xf32> to vector<2x8xf32>
    %32 = vector.shape_cast %29 : vector<1x8xf32> to vector<1x8xf32>
    %33 = vector.broadcast %32 : vector<1x8xf32> to vector<2x8xf32>
    %34 = arith.select %26, %31, %33 : vector<2x8xi1>, vector<2x8xf32>
    %c0_15 = arith.constant 0 : index
    %c0_16 = arith.constant 0 : index
    %35 = vector.load %arg6[%c0_15, %c0_16] : memref<2x8xf32, #tpu.memory_space<vmem>>, vector<2x8xf32>
    tpu.vector_store %arg6[%c0_15, %c0_16], %34 {strides = array<i32>} : memref<2x8xf32, #tpu.memory_space<vmem>>, vector<2x8xf32>,
    return
  }
  func.func @transform_0(%arg0: i32) -> (i32, i32) {
    %c0_i32 = arith.constant 0 : i32
    %c0_i32_0 = arith.constant 0 : i32
    return %arg0, %c0_i32 : i32, i32
  }
  func.func @transform_1(%arg0: i32) -> (i32, i32) {
    %c0_i32 = arith.constant 0 : i32
    %c0_i32_0 = arith.constant 0 : i32
    %c0_i32_1 = arith.constant 0 : i32
    return %c0_i32, %c0_i32_0 : i32, i32
  }
  func.func @transform_2(%arg0: i32) -> (i32, i32) {
    %c0_i32 = arith.constant 0 : i32
    %c0_i32_0 = arith.constant 0 : i32
    %c0_i32_1 = arith.constant 0 : i32
    return %c0_i32, %c0_i32_0 : i32, i32
  }
  func.func @transform_3(%arg0: i32) -> (i32, i32) {
    %c0_i32 = arith.constant 0 : i32
    %c0_i32_0 = arith.constant 0 : i32
    %c0_i32_1 = arith.constant 0 : i32
    return %c0_i32, %c0_i32_0 : i32, i32
  }
  func.func @transform_4(%arg0: i32) -> (i32, i32) {
    %c0_i32 = arith.constant 0 : i32
    %c0_i32_0 = arith.constant 0 : i32
    %c0_i32_1 = arith.constant 0 : i32
    return %c0_i32, %c0_i32_0 : i32, i32
  }
  func.func @transform_5(%arg0: i32) -> (i32, i32) {
    %c0_i32 = arith.constant 0 : i32
    %c0_i32_0 = arith.constant 0 : i32
    return %c0_i32, %arg0 : i32, i32
  }
}

</mosaic_0001>

<llo_original>
// kernel: densenet_head_forward.1
$region0: #{densenet_head_forward.1}
  #allocation0 [shape = 'u32[]', space=smem, size = 0x4, offset = 0x4, fixed_abs, tag = 'smem constant byte address 0x4 - core index']
  #allocation1 [shape = 'u32[72,128]{1,0:T(1,128)}', space=vmem, size = 0x9000, scoped, tag = 'internal scratch']
  #allocation2 [shape = 'f32[1,1]{1,0:T(1,128)S(6)}', space=smem, size = 0x200, scoped, tag = 'scoped memory for densenet_head_forward.1']
  %s0 = inlined_call_operand.vmem [shape: f32[8,4864], index: 0, kind: input, shape index: {}]
  %s1 = inlined_call_operand.vmem [shape: f32[4864,128], index: 1, kind: input, shape index: {}]
  %s2 = inlined_call_operand.vmem [shape: f32[1,128], index: 2, kind: input, shape index: {}]
  %s3 = inlined_call_operand.vmem [shape: f32[1,128], index: 3, kind: input, shape index: {}]
  %s4 = inlined_call_operand.<no memory space> [shape: f32[1,1], index: 4, kind: input, shape index: {}]
  %s5 = inlined_call_operand.hbm [shape: f32[2,8], index: 5, kind: output, shape index: {}]
  %s6 = sld [smem:[#allocation0]]
  $region30: #{densenet_head_forward.1} parent=0
    _
  %s8 = ssub.s32 1, %s6
  %s9 = scalar_select 0, %s8, %s6
  %10 = sst [smem:[#allocation2]] %s4
  $region1: #{densenet_head_forward.1} parent=0
    #allocation3 [shape = 'u8[1024]{0}', space=vmem, size = 0x400, scoped, tag = 'output window, operand 0, single buffered']
    #allocation4 [shape = 's32[1]{0}', space=sflag, size = 0x4, scoped, tag = 'scoped memory for densenet_head_forward.1']
    %11 = vsyncpa [#allocation4], 0
    // Predicated region
    $region2: #{densenet_head_forward.1} parent=1 // pred_check
      _
    $region3: #{densenet_head_forward.1} parent=1 // pred_check_branch
      %13 = sbr.rel (0) target = $region5
    $region4: #{densenet_head_forward.1} parent=1 // pred_region
      _
    $region5: #{densenet_head_forward.1} parent=1 // pred_fallthru
      _
    // Predicated region
    $region6: #{densenet_head_forward.1} parent=1 // pred_check
      _
    $region7: #{densenet_head_forward.1} parent=1 // pred_check_branch
      %15 = sbr.rel (0) target = $region9
    $region8: #{densenet_head_forward.1} parent=1 // pred_region
      _
    $region9: #{densenet_head_forward.1} parent=1 // pred_fallthru
      _
    // Predicated region
    $region10: #{densenet_head_forward.1} parent=1 // pred_check
      _
    $region11: #{densenet_head_forward.1} parent=1 // pred_check_branch
      %17 = sbr.rel (0) target = $region13
    $region12: #{densenet_head_forward.1} parent=1 // pred_region
      _
    $region13: #{densenet_head_forward.1} parent=1 // pred_fallthru
      _
    // Predicated region
    $region14: #{densenet_head_forward.1} parent=1 // pred_check
      _
    $region15: #{densenet_head_forward.1} parent=1 // pred_check_branch
      %19 = sbr.rel (0) target = $region17
    $region16: #{densenet_head_forward.1} parent=1 // pred_region
      _
    $region17: #{densenet_head_forward.1} parent=1 // pred_fallthru
      _
    // Predicated region
    $region18: #{densenet_head_forward.1} parent=1 // pred_check
      _
    $region19: #{densenet_head_forward.1} parent=1 // pred_check_branch
      %21 = sbr.rel (0) target = $region21
    $region20: #{densenet_head_forward.1} parent=1 // pred_region
      _
    $region21: #{densenet_head_forward.1} parent=1 // pred_fallthru
      _
    %v22 = vld [vmem:[%s0] sm:$0xff]
    %v23 = vld [vmem:[%s0 + $0x8] sm:$0xff]
    %v24 = vld [vmem:[%s0 + $0x10] sm:$0xff]
    %v25 = vld [vmem:[%s0 + $0x18] sm:$0xff]
    %v26 = vld [vmem:[%s0 + $0x20] sm:$0xff]
    %v27 = vld [vmem:[%s0 + $0x28] sm:$0xff]
    %v28 = vld [vmem:[%s0 + $0x30] sm:$0xff]
    %v29 = vld [vmem:[%s0 + $0x38] sm:$0xff]
    %v30 = vld [vmem:[%s0 + $0x40] sm:$0xff]
    %v31 = vld [vmem:[%s0 + $0x48] sm:$0xff]
    %v32 = vld [vmem:[%s0 + $0x50] sm:$0xff]
    %v33 = vld [vmem:[%s0 + $0x58] sm:$0xff]
    %v34 = vld [vmem:[%s0 + $0x60] sm:$0xff]
    %v35 = vld [vmem:[%s0 + $0x68] sm:$0xff]
    %v36 = vld [vmem:[%s0 + $0x70] sm:$0xff]
    %v37 = vld [vmem:[%s0 + $0x78] sm:$0xff]
    %v38 = vld [vmem:[%s0 + $0x80] sm:$0xff]
    %v39 = vld [vmem:[%s0 + $0x88] sm:$0xff]
    %v40 = vld [vmem:[%s0 + $0x90] sm:$0xff]
    %v41 = vld [vmem:[%s0 + $0x98] sm:$0xff]
    %v42 = vld [vmem:[%s0 + $0xa0] sm:$0xff]
    %v43 = vld [vmem:[%s0 + $0xa8] sm:$0xff]
    %v44 = vld [vmem:[%s0 + $0xb0] sm:$0xff]
    %v45 = vld [vmem:[%s0 + $0xb8] sm:$0xff]
    %v46 = vld [vmem:[%s0 + $0xc0] sm:$0xff]
    %v47 = vld [vmem:[%s0 + $0xc8] sm:$0xff]
    %v48 = vld [vmem:[%s0 + $0xd0] sm:$0xff]
    %v49 = vld [vmem:[%s0 + $0xd8] sm:$0xff]
    %v50 = vld [vmem:[%s0 + $0xe0] sm:$0xff]
    %v51 = vld [vmem:[%s0 + $0xe8] sm:$0xff]
    %v52 = vld [vmem:[%s0 + $0xf0] sm:$0xff]
    %v53 = vld [vmem:[%s0 + $0xf8] sm:$0xff]
    %v54 = vld [vmem:[%s0 + $0x100] sm:$0xff]
    %v55 = vld [vmem:[%s0 + $0x108] sm:$0xff]
    %v56 = vld [vmem:[%s0 + $0x110] sm:$0xff]
    %v57 = vld [vmem:[%s0 + $0x118] sm:$0xff]
    %v58 = vld [vmem:[%s0 + $0x120] sm:$0xff]
    %v59 = vld [vmem:[%s0 + $0x128] sm:$0xff]
    %v60 = vld [vmem:[%s1] sm:$0xff]
    %v61 = vld [vmem:[%s1 + $0x8] sm:$0xff]
    %v62 = vld [vmem:[%s1 + $0x10] sm:$0xff]
    %v63 = vld [vmem:[%s1 + $0x18] sm:$0xff]
    %v64 = vld [vmem:[%s1 + $0x20] sm:$0xff]
    %v65 = vld [vmem:[%s1 + $0x28] sm:$0xff]
    %v66 = vld [vmem:[%s1 + $0x30] sm:$0xff]
    %v67 = vld [vmem:[%s1 + $0x38] sm:$0xff]
    %v68 = vld [vmem:[%s1 + $0x40] sm:$0xff]
    %v69 = vld [vmem:[%s1 + $0x48] sm:$0xff]
    %v70 = vld [vmem:[%s1 + $0x50] sm:$0xff]
    %v71 = vld [vmem:[%s1 + $0x58] sm:$0xff]
    %v72 = vld [vmem:[%s1 + $0x60] sm:$0xff]
    %v73 = vld [vmem:[%s1 + $0x68] sm:$0xff]
    %v74 = vld [vmem:[%s1 + $0x70] sm:$0xff]
    %v75 = vld [vmem:[%s1 + $0x78] sm:$0xff]
    %v76 = vld [vmem:[%s1 + $0x80] sm:$0xff]
    %v77 = vld [vmem:[%s1 + $0x88] sm:$0xff]
    %v78 = vld [vmem:[%s1 + $0x90] sm:$0xff]
    %v79 = vld [vmem:[%s1 + $0x98] sm:$0xff]
    %v80 = vld [vmem:[%s1 + $0xa0] sm:$0xff]
    %v81 = vld [vmem:[%s1 + $0xa8] sm:$0xff]
    %v82 = vld [vmem:[%s1 + $0xb0] sm:$0xff]
    %v83 = vld [vmem:[%s1 + $0xb8] sm:$0xff]
    %v84 = vld [vmem:[%s1 + $0xc0] sm:$0xff]
    %v85 = vld [vmem:[%s1 + $0xc8] sm:$0xff]
    %v86 = vld [vmem:[%s1 + $0xd0] sm:$0xff]
    %v87 = vld [vmem:[%s1 + $0xd8] sm:$0xff]
    %v88 = vld [vmem:[%s1 + $0xe0] sm:$0xff]
    %v89 = vld [vmem:[%s1 + $0xe8] sm:$0xff]
    %v90 = vld [vmem:[%s1 + $0xf0] sm:$0xff]
    %v91 = vld [vmem:[%s1 + $0xf8] sm:$0xff]
    %v92 = vld [vmem:[%s1 + $0x100] sm:$0xff]
    %v93 = vld [vmem:[%s1 + $0x108] sm:$0xff]
    %v94 = vld [vmem:[%s1 + $0x110] sm:$0xff]
    %v95 = vld [vmem:[%s1 + $0x118] sm:$0xff]
    %v96 = vld [vmem:[%s1 + $0x120] sm:$0xff]
    %v97 = vld [vmem:[%s1 + $0x128] sm:$0xff]
    %v98 = vld [vmem:[%s1 + $0x130] sm:$0xff]
    %v99 = vld [vmem:[%s1 + $0x138] sm:$0xff]
    %v100 = vld [vmem:[%s1 + $0x140] sm:$0xff]
    %v101 = vld [vmem:[%s1 + $0x148] sm:$0xff]
    %v102 = vld [vmem:[%s1 + $0x150] sm:$0xff]
    %v103 = vld [vmem:[%s1 + $0x158] sm:$0xff]
    %v104 = vld [vmem:[%s1 + $0x160] sm:$0xff]
    %v105 = vld [vmem:[%s1 + $0x168] sm:$0xff]
    %v106 = vld [vmem:[%s1 + $0x170] sm:$0xff]
    %v107 = vld [vmem:[%s1 + $0x178] sm:$0xff]
    %v108 = vld [vmem:[%s1 + $0x180] sm:$0xff]
    %v109 = vld [vmem:[%s1 + $0x188] sm:$0xff]
    %v110 = vld [vmem:[%s1 + $0x190] sm:$0xff]
    %v111 = vld [vmem:[%s1 + $0x198] sm:$0xff]
    %v112 = vld [vmem:[%s1 + $0x1a0] sm:$0xff]
    %v113 = vld [vmem:[%s1 + $0x1a8] sm:$0xff]
    %v114 = vld [vmem:[%s1 + $0x1b0] sm:$0xff]
    %v115 = vld [vmem:[%s1 + $0x1b8] sm:$0xff]
    %v116 = vld [vmem:[%s1 + $0x1c0] sm:$0xff]
    %v117 = vld [vmem:[%s1 + $0x1c8] sm:$0xff]
    %v118 = vld [vmem:[%s1 + $0x1d0] sm:$0xff]
    %v119 = vld [vmem:[%s1 + $0x1d8] sm:$0xff]
    %v120 = vld [vmem:[%s1 + $0x1e0] sm:$0xff]
    %v121 = vld [vmem:[%s1 + $0x1e8] sm:$0xff]
    %v122 = vld [vmem:[%s1 + $0x1f0] sm:$0xff]
    %v123 = vld [vmem:[%s1 + $0x1f8] sm:$0xff]
    %v124 = vld [vmem:[%s1 + $0x200] sm:$0xff]
    %v125 = vld [vmem:[%s1 + $0x208] sm:$0xff]
    %v126 = vld [vmem:[%s1 + $0x210] sm:$0xff]
    %v127 = vld [vmem:[%s1 + $0x218] sm:$0xff]
    %v128 = vld [vmem:[%s1 + $0x220] sm:$0xff]
    %v129 = vld [vmem:[%s1 + $0x228] sm:$0xff]
    %v130 = vld [vmem:[%s1 + $0x230] sm:$0xff]
    %v131 = vld [vmem:[%s1 + $0x238] sm:$0xff]
    %v132 = vld [vmem:[%s1 + $0x240] sm:$0xff]
    %v133 = vld [vmem:[%s1 + $0x248] sm:$0xff]
    %v134 = vld [vmem:[%s1 + $0x250] sm:$0xff]
    %v135 = vld [vmem:[%s1 + $0x258] sm:$0xff]
    %v136 = vld [vmem:[%s1 + $0x260] sm:$0xff]
    %v137 = vld [vmem:[%s1 + $0x268] sm:$0xff]
    %v138 = vld [vmem:[%s1 + $0x270] sm:$0xff]
    %v139 = vld [vmem:[%s1 + $0x278] sm:$0xff]
    %v140 = vld [vmem:[%s1 + $0x280] sm:$0xff]
    %v141 = vld [vmem:[%s1 + $0x288] sm:$0xff]
    %v142 = vld [vmem:[%s1 + $0x290] sm:$0xff]
    %v143 = vld [vmem:[%s1 + $0x298] sm:$0xff]
    %v144 = vld [vmem:[%s1 + $0x2a0] sm:$0xff]
    %v145 = vld [vmem:[%s1 + $0x2a8] sm:$0xff]
    %v146 = vld [vmem:[%s1 + $0x2b0] sm:$0xff]
    %v147 = vld [vmem:[%s1 + $0x2b8] sm:$0xff]
    %v148 = vld [vmem:[%s1 + $0x2c0] sm:$0xff]
    %v149 = vld [vmem:[%s1 + $0x2c8] sm:$0xff]
    %v150 = vld [vmem:[%s1 + $0x2d0] sm:$0xff]
    %v151 = vld [vmem:[%s1 + $0x2d8] sm:$0xff]
    %v152 = vld [vmem:[%s1 + $0x2e0] sm:$0xff]
    %v153 = vld [vmem:[%s1 + $0x2e8] sm:$0xff]
    %v154 = vld [vmem:[%s1 + $0x2f0] sm:$0xff]
    %v155 = vld [vmem:[%s1 + $0x2f8] sm:$0xff]
    %v156 = vld [vmem:[%s1 + $0x300] sm:$0xff]
    %v157 = vld [vmem:[%s1 + $0x308] sm:$0xff]
    %v158 = vld [vmem:[%s1 + $0x310] sm:$0xff]
    %v159 = vld [vmem:[%s1 + $0x318] sm:$0xff]
    %v160 = vld [vmem:[%s1 + $0x320] sm:$0xff]
    %v161 = vld [vmem:[%s1 + $0x328] sm:$0xff]
    %v162 = vld [vmem:[%s1 + $0x330] sm:$0xff]
    %v163 = vld [vmem:[%s1 + $0x338] sm:$0xff]
    %v164 = vld [vmem:[%s1 + $0x340] sm:$0xff]
    %v165 = vld [vmem:[%s1 + $0x348] sm:$0xff]
    %v166 = vld [vmem:[%s1 + $0x350] sm:$0xff]
    %v167 = vld [vmem:[%s1 + $0x358] sm:$0xff]
    %v168 = vld [vmem:[%s1 + $0x360] sm:$0xff]
    %v169 = vld [vmem:[%s1 + $0x368] sm:$0xff]
    %v170 = vld [vmem:[%s1 + $0x370] sm:$0xff]
    %v171 = vld [vmem:[%s1 + $0x378] sm:$0xff]
    %v172 = vld [vmem:[%s1 + $0x380] sm:$0xff]
    %v173 = vld [vmem:[%s1 + $0x388] sm:$0xff]
    %v174 = vld [vmem:[%s1 + $0x390] sm:$0xff]
    %v175 = vld [vmem:[%s1 + $0x398] sm:$0xff]
    %v176 = vld [vmem:[%s1 + $0x3a0] sm:$0xff]
    %v177 = vld [vmem:[%s1 + $0x3a8] sm:$0xff]
    %v178 = vld [vmem:[%s1 + $0x3b0] sm:$0xff]
    %v179 = vld [vmem:[%s1 + $0x3b8] sm:$0xff]
    %v180 = vld [vmem:[%s1 + $0x3c0] sm:$0xff]
    %v181 = vld [vmem:[%s1 + $0x3c8] sm:$0xff]
    %v182 = vld [vmem:[%s1 + $0x3d0] sm:$0xff]
    %v183 = vld [vmem:[%s1 + $0x3d8] sm:$0xff]
    %v184 = vld [vmem:[%s1 + $0x3e0] sm:$0xff]
    %v185 = vld [vmem:[%s1 + $0x3e8] sm:$0xff]
    %v186 = vld [vmem:[%s1 + $0x3f0] sm:$0xff]
    %v187 = vld [vmem:[%s1 + $0x3f8] sm:$0xff]
    %v188 = vld [vmem:[%s1 + $0x400] sm:$0xff]
    %v189 = vld [vmem:[%s1 + $0x408] sm:$0xff]
    %v190 = vld [vmem:[%s1 + $0x410] sm:$0xff]
    %v191 = vld [vmem:[%s1 + $0x418] sm:$0xff]
    %v192 = vld [vmem:[%s1 + $0x420] sm:$0xff]
    %v193 = vld [vmem:[%s1 + $0x428] sm:$0xff]
    %v194 = vld [vmem:[%s1 + $0x430] sm:$0xff]
    %v195 = vld [vmem:[%s1 + $0x438] sm:$0xff]
    %v196 = vld [vmem:[%s1 + $0x440] sm:$0xff]
    %v197 = vld [vmem:[%s1 + $0x448] sm:$0xff]
    %v198 = vld [vmem:[%s1 + $0x450] sm:$0xff]
    %v199 = vld [vmem:[%s1 + $0x458] sm:$0xff]
    %v200 = vld [vmem:[%s1 + $0x460] sm:$0xff]
    %v201 = vld [vmem:[%s1 + $0x468] sm:$0xff]
    %v202 = vld [vmem:[%s1 + $0x470] sm:$0xff]
    %v203 = vld [vmem:[%s1 + $0x478] sm:$0xff]
    %v204 = vld [vmem:[%s1 + $0x480] sm:$0xff]
    %v205 = vld [vmem:[%s1 + $0x488] sm:$0xff]
    %v206 = vld [vmem:[%s1 + $0x490] sm:$0xff]
    %v207 = vld [vmem:[%s1 + $0x498] sm:$0xff]
    %v208 = vld [vmem:[%s1 + $0x4a0] sm:$0xff]
    %v209 = vld [vmem:[%s1 + $0x4a8] sm:$0xff]
    %v210 = vld [vmem:[%s1 + $0x4b0] sm:$0xff]
    %v211 = vld [vmem:[%s1 + $0x4b8] sm:$0xff]
    %v212 = vld [vmem:[%s1 + $0x4c0] sm:$0xff]
    %v213 = vld [vmem:[%s1 + $0x4c8] sm:$0xff]
    %v214 = vld [vmem:[%s1 + $0x4d0] sm:$0xff]
    %v215 = vld [vmem:[%s1 + $0x4d8] sm:$0xff]
    %v216 = vld [vmem:[%s1 + $0x4e0] sm:$0xff]
    %v217 = vld [vmem:[%s1 + $0x4e8] sm:$0xff]
    %v218 = vld [vmem:[%s1 + $0x4f0] sm:$0xff]
    %v219 = vld [vmem:[%s1 + $0x4f8] sm:$0xff]
    %v220 = vld [vmem:[%s1 + $0x500] sm:$0xff]
    %v221 = vld [vmem:[%s1 + $0x508] sm:$0xff]
    %v222 = vld [vmem:[%s1 + $0x510] sm:$0xff]
    %v223 = vld [vmem:[%s1 + $0x518] sm:$0xff]
    %v224 = vld [vmem:[%s1 + $0x520] sm:$0xff]
    %v225 = vld [vmem:[%s1 + $0x528] sm:$0xff]
    %v226 = vld [vmem:[%s1 + $0x530] sm:$0xff]
    %v227 = vld [vmem:[%s1 + $0x538] sm:$0xff]
    %v228 = vld [vmem:[%s1 + $0x540] sm:$0xff]
    %v229 = vld [vmem:[%s1 + $0x548] sm:$0xff]
    %v230 = vld [vmem:[%s1 + $0x550] sm:$0xff]
    %v231 = vld [vmem:[%s1 + $0x558] sm:$0xff]
    %v232 = vld [vmem:[%s1 + $0x560] sm:$0xff]
    %v233 = vld [vmem:[%s1 + $0x568] sm:$0xff]
    %v234 = vld [vmem:[%s1 + $0x570] sm:$0xff]
    %v235 = vld [vmem:[%s1 + $0x578] sm:$0xff]
    %v236 = vld [vmem:[%s1 + $0x580] sm:$0xff]
    %v237 = vld [vmem:[%s1 + $0x588] sm:$0xff]
    %v238 = vld [vmem:[%s1 + $0x590] sm:$0xff]
    %v239 = vld [vmem:[%s1 + $0x598] sm:$0xff]
    %v240 = vld [vmem:[%s1 + $0x5a0] sm:$0xff]
    %v241 = vld [vmem:[%s1 + $0x5a8] sm:$0xff]
    %v242 = vld [vmem:[%s1 + $0x5b0] sm:$0xff]
    %v243 = vld [vmem:[%s1 + $0x5b8] sm:$0xff]
    %v244 = vld [vmem:[%s1 + $0x5c0] sm:$0xff]
    %v245 = vld [vmem:[%s1 + $0x5c8] sm:$0xff]
    %v246 = vld [vmem:[%s1 + $0x5d0] sm:$0xff]
    %v247 = vld [vmem:[%s1 + $0x5d8] sm:$0xff]
    %v248 = vld [vmem:[%s1 + $0x5e0] sm:$0xff]
    %v249 = vld [vmem:[%s1 + $0x5e8] sm:$0xff]
    %v250 = vld [vmem:[%s1 + $0x5f0] sm:$0xff]
    %v251 = vld [vmem:[%s1 + $0x5f8] sm:$0xff]
    %v252 = vld [vmem:[%s1 + $0x600] sm:$0xff]
    %v253 = vld [vmem:[%s1 + $0x608] sm:$0xff]
    %v254 = vld [vmem:[%s1 + $0x610] sm:$0xff]
    %v255 = vld [vmem:[%s1 + $0x618] sm:$0xff]
    %v256 = vld [vmem:[%s1 + $0x620] sm:$0xff]
    %v257 = vld [vmem:[%s1 + $0x628] sm:$0xff]
    %v258 = vld [vmem:[%s1 + $0x630] sm:$0xff]
    %v259 = vld [vmem:[%s1 + $0x638] sm:$0xff]
    %v260 = vld [vmem:[%s1 + $0x640] sm:$0xff]
    %v261 = vld [vmem:[%s1 + $0x648] sm:$0xff]
    %v262 = vld [vmem:[%s1 + $0x650] sm:$0xff]
    %v263 = vld [vmem:[%s1 + $0x658] sm:$0xff]
    %v264 = vld [vmem:[%s1 + $0x660] sm:$0xff]
    %v265 = vld [vmem:[%s1 + $0x668] sm:$0xff]
    %v266 = vld [vmem:[%s1 + $0x670] sm:$0xff]
    %v267 = vld [vmem:[%s1 + $0x678] sm:$0xff]
    %v268 = vld [vmem:[%s1 + $0x680] sm:$0xff]
    %v269 = vld [vmem:[%s1 + $0x688] sm:$0xff]
    %v270 = vld [vmem:[%s1 + $0x690] sm:$0xff]
    %v271 = vld [vmem:[%s1 + $0x698] sm:$0xff]
    %v272 = vld [vmem:[%s1 + $0x6a0] sm:$0xff]
    %v273 = vld [vmem:[%s1 + $0x6a8] sm:$0xff]
    %v274 = vld [vmem:[%s1 + $0x6b0] sm:$0xff]
    %v275 = vld [vmem:[%s1 + $0x6b8] sm:$0xff]
    %v276 = vld [vmem:[%s1 + $0x6c0] sm:$0xff]
    %v277 = vld [vmem:[%s1 + $0x6c8] sm:$0xff]
    %v278 = vld [vmem:[%s1 + $0x6d0] sm:$0xff]
    %v279 = vld [vmem:[%s1 + $0x6d8] sm:$0xff]
    %v280 = vld [vmem:[%s1 + $0x6e0] sm:$0xff]
    %v281 = vld [vmem:[%s1 + $0x6e8] sm:$0xff]
    %v282 = vld [vmem:[%s1 + $0x6f0] sm:$0xff]
    %v283 = vld [vmem:[%s1 + $0x6f8] sm:$0xff]
    %v284 = vld [vmem:[%s1 + $0x700] sm:$0xff]
    %v285 = vld [vmem:[%s1 + $0x708] sm:$0xff]
    %v286 = vld [vmem:[%s1 + $0x710] sm:$0xff]
    %v287 = vld [vmem:[%s1 + $0x718] sm:$0xff]
    %v288 = vld [vmem:[%s1 + $0x720] sm:$0xff]
    %v289 = vld [vmem:[%s1 + $0x728] sm:$0xff]
    %v290 = vld [vmem:[%s1 + $0x730] sm:$0xff]
    %v291 = vld [vmem:[%s1 + $0x738] sm:$0xff]
    %v292 = vld [vmem:[%s1 + $0x740] sm:$0xff]
    %v293 = vld [vmem:[%s1 + $0x748] sm:$0xff]
    %v294 = vld [vmem:[%s1 + $0x750] sm:$0xff]
    %v295 = vld [vmem:[%s1 + $0x758] sm:$0xff]
    %v296 = vld [vmem:[%s1 + $0x760] sm:$0xff]
    %v297 = vld [vmem:[%s1 + $0x768] sm:$0xff]
    %v298 = vld [vmem:[%s1 + $0x770] sm:$0xff]
    %v299 = vld [vmem:[%s1 + $0x778] sm:$0xff]
    %v300 = vld [vmem:[%s1 + $0x780] sm:$0xff]
    %v301 = vld [vmem:[%s1 + $0x788] sm:$0xff]
    %v302 = vld [vmem:[%s1 + $0x790] sm:$0xff]
    %v303 = vld [vmem:[%s1 + $0x798] sm:$0xff]
    %v304 = vld [vmem:[%s1 + $0x7a0] sm:$0xff]
    %v305 = vld [vmem:[%s1 + $0x7a8] sm:$0xff]
    %v306 = vld [vmem:[%s1 + $0x7b0] sm:$0xff]
    %v307 = vld [vmem:[%s1 + $0x7b8] sm:$0xff]
    %v308 = vld [vmem:[%s1 + $0x7c0] sm:$0xff]
    %v309 = vld [vmem:[%s1 + $0x7c8] sm:$0xff]
    %v310 = vld [vmem:[%s1 + $0x7d0] sm:$0xff]
    %v311 = vld [vmem:[%s1 + $0x7d8] sm:$0xff]
    %v312 = vld [vmem:[%s1 + $0x7e0] sm:$0xff]
    %v313 = vld [vmem:[%s1 + $0x7e8] sm:$0xff]
    %v314 = vld [vmem:[%s1 + $0x7f0] sm:$0xff]
    %v315 = vld [vmem:[%s1 + $0x7f8] sm:$0xff]
    %v316 = vld [vmem:[%s1 + $0x800] sm:$0xff]
    %v317 = vld [vmem:[%s1 + $0x808] sm:$0xff]
    %v318 = vld [vmem:[%s1 + $0x810] sm:$0xff]
    %v319 = vld [vmem:[%s1 + $0x818] sm:$0xff]
    %v320 = vld [vmem:[%s1 + $0x820] sm:$0xff]
    %v321 = vld [vmem:[%s1 + $0x828] sm:$0xff]
    %v322 = vld [vmem:[%s1 + $0x830] sm:$0xff]
    %v323 = vld [vmem:[%s1 + $0x838] sm:$0xff]
    %v324 = vld [vmem:[%s1 + $0x840] sm:$0xff]
    %v325 = vld [vmem:[%s1 + $0x848] sm:$0xff]
    %v326 = vld [vmem:[%s1 + $0x850] sm:$0xff]
    %v327 = vld [vmem:[%s1 + $0x858] sm:$0xff]
    %v328 = vld [vmem:[%s1 + $0x860] sm:$0xff]
    %v329 = vld [vmem:[%s1 + $0x868] sm:$0xff]
    %v330 = vld [vmem:[%s1 + $0x870] sm:$0xff]
    %v331 = vld [vmem:[%s1 + $0x878] sm:$0xff]
    %v332 = vld [vmem:[%s1 + $0x880] sm:$0xff]
    %v333 = vld [vmem:[%s1 + $0x888] sm:$0xff]
    %v334 = vld [vmem:[%s1 + $0x890] sm:$0xff]
    %v335 = vld [vmem:[%s1 + $0x898] sm:$0xff]
    %v336 = vld [vmem:[%s1 + $0x8a0] sm:$0xff]
    %v337 = vld [vmem:[%s1 + $0x8a8] sm:$0xff]
    %v338 = vld [vmem:[%s1 + $0x8b0] sm:$0xff]
    %v339 = vld [vmem:[%s1 + $0x8b8] sm:$0xff]
    %v340 = vld [vmem:[%s1 + $0x8c0] sm:$0xff]
    %v341 = vld [vmem:[%s1 + $0x8c8] sm:$0xff]
    %v342 = vld [vmem:[%s1 + $0x8d0] sm:$0xff]
    %v343 = vld [vmem:[%s1 + $0x8d8] sm:$0xff]
    %v344 = vld [vmem:[%s1 + $0x8e0] sm:$0xff]
    %v345 = vld [vmem:[%s1 + $0x8e8] sm:$0xff]
    %v346 = vld [vmem:[%s1 + $0x8f0] sm:$0xff]
    %v347 = vld [vmem:[%s1 + $0x8f8] sm:$0xff]
    %v348 = vld [vmem:[%s1 + $0x900] sm:$0xff]
    %v349 = vld [vmem:[%s1 + $0x908] sm:$0xff]
    %v350 = vld [vmem:[%s1 + $0x910] sm:$0xff]
    %v351 = vld [vmem:[%s1 + $0x918] sm:$0xff]
    %v352 = vld [vmem:[%s1 + $0x920] sm:$0xff]
    %v353 = vld [vmem:[%s1 + $0x928] sm:$0xff]
    %v354 = vld [vmem:[%s1 + $0x930] sm:$0xff]
    %v355 = vld [vmem:[%s1 + $0x938] sm:$0xff]
    %v356 = vld [vmem:[%s1 + $0x940] sm:$0xff]
    %v357 = vld [vmem:[%s1 + $0x948] sm:$0xff]
    %v358 = vld [vmem:[%s1 + $0x950] sm:$0xff]
    %v359 = vld [vmem:[%s1 + $0x958] sm:$0xff]
    %v360 = vld [vmem:[%s1 + $0x960] sm:$0xff]
    %v361 = vld [vmem:[%s1 + $0x968] sm:$0xff]
    %v362 = vld [vmem:[%s1 + $0x970] sm:$0xff]
    %v363 = vld [vmem:[%s1 + $0x978] sm:$0xff]
    %v364 = vld [vmem:[%s1 + $0x980] sm:$0xff]
    %v365 = vld [vmem:[%s1 + $0x988] sm:$0xff]
    %v366 = vld [vmem:[%s1 + $0x990] sm:$0xff]
    %v367 = vld [vmem:[%s1 + $0x998] sm:$0xff]
    %v368 = vld [vmem:[%s1 + $0x9a0] sm:$0xff]
    %v369 = vld [vmem:[%s1 + $0x9a8] sm:$0xff]
    %v370 = vld [vmem:[%s1 + $0x9b0] sm:$0xff]
    %v371 = vld [vmem:[%s1 + $0x9b8] sm:$0xff]
    %v372 = vld [vmem:[%s1 + $0x9c0] sm:$0xff]
    %v373 = vld [vmem:[%s1 + $0x9c8] sm:$0xff]
    %v374 = vld [vmem:[%s1 + $0x9d0] sm:$0xff]
    %v375 = vld [vmem:[%s1 + $0x9d8] sm:$0xff]
    %v376 = vld [vmem:[%s1 + $0x9e0] sm:$0xff]
    %v377 = vld [vmem:[%s1 + $0x9e8] sm:$0xff]
    %v378 = vld [vmem:[%s1 + $0x9f0] sm:$0xff]
    %v379 = vld [vmem:[%s1 + $0x9f8] sm:$0xff]
    %v380 = vld [vmem:[%s1 + $0xa00] sm:$0xff]
    %v381 = vld [vmem:[%s1 + $0xa08] sm:$0xff]
    %v382 = vld [vmem:[%s1 + $0xa10] sm:$0xff]
    %v383 = vld [vmem:[%s1 + $0xa18] sm:$0xff]
    %v384 = vld [vmem:[%s1 + $0xa20] sm:$0xff]
    %v385 = vld [vmem:[%s1 + $0xa28] sm:$0xff]
    %v386 = vld [vmem:[%s1 + $0xa30] sm:$0xff]
    %v387 = vld [vmem:[%s1 + $0xa38] sm:$0xff]
    %v388 = vld [vmem:[%s1 + $0xa40] sm:$0xff]
    %v389 = vld [vmem:[%s1 + $0xa48] sm:$0xff]
    %v390 = vld [vmem:[%s1 + $0xa50] sm:$0xff]
    %v391 = vld [vmem:[%s1 + $0xa58] sm:$0xff]
    %v392 = vld [vmem:[%s1 + $0xa60] sm:$0xff]
    %v393 = vld [vmem:[%s1 + $0xa68] sm:$0xff]
    %v394 = vld [vmem:[%s1 + $0xa70] sm:$0xff]
    %v395 = vld [vmem:[%s1 + $0xa78] sm:$0xff]
    %v396 = vld [vmem:[%s1 + $0xa80] sm:$0xff]
    %v397 = vld [vmem:[%s1 + $0xa88] sm:$0xff]
    %v398 = vld [vmem:[%s1 + $0xa90] sm:$0xff]
    %v399 = vld [vmem:[%s1 + $0xa98] sm:$0xff]
    %v400 = vld [vmem:[%s1 + $0xaa0] sm:$0xff]
    %v401 = vld [vmem:[%s1 + $0xaa8] sm:$0xff]
    %v402 = vld [vmem:[%s1 + $0xab0] sm:$0xff]
    %v403 = vld [vmem:[%s1 + $0xab8] sm:$0xff]
    %v404 = vld [vmem:[%s1 + $0xac0] sm:$0xff]
    %v405 = vld [vmem:[%s1 + $0xac8] sm:$0xff]
    %v406 = vld [vmem:[%s1 + $0xad0] sm:$0xff]
    %v407 = vld [vmem:[%s1 + $0xad8] sm:$0xff]
    %v408 = vld [vmem:[%s1 + $0xae0] sm:$0xff]
    %v409 = vld [vmem:[%s1 + $0xae8] sm:$0xff]
    %v410 = vld [vmem:[%s1 + $0xaf0] sm:$0xff]
    %v411 = vld [vmem:[%s1 + $0xaf8] sm:$0xff]
    %v412 = vld [vmem:[%s1 + $0xb00] sm:$0xff]
    %v413 = vld [vmem:[%s1 + $0xb08] sm:$0xff]
    %v414 = vld [vmem:[%s1 + $0xb10] sm:$0xff]
    %v415 = vld [vmem:[%s1 + $0xb18] sm:$0xff]
    %v416 = vld [vmem:[%s1 + $0xb20] sm:$0xff]
    %v417 = vld [vmem:[%s1 + $0xb28] sm:$0xff]
    %v418 = vld [vmem:[%s1 + $0xb30] sm:$0xff]
    %v419 = vld [vmem:[%s1 + $0xb38] sm:$0xff]
    %v420 = vld [vmem:[%s1 + $0xb40] sm:$0xff]
    %v421 = vld [vmem:[%s1 + $0xb48] sm:$0xff]
    %v422 = vld [vmem:[%s1 + $0xb50] sm:$0xff]
    %v423 = vld [vmem:[%s1 + $0xb58] sm:$0xff]
    %v424 = vld [vmem:[%s1 + $0xb60] sm:$0xff]
    %v425 = vld [vmem:[%s1 + $0xb68] sm:$0xff]
    %v426 = vld [vmem:[%s1 + $0xb70] sm:$0xff]
    %v427 = vld [vmem:[%s1 + $0xb78] sm:$0xff]
    %v428 = vld [vmem:[%s1 + $0xb80] sm:$0xff]
    %v429 = vld [vmem:[%s1 + $0xb88] sm:$0xff]
    %v430 = vld [vmem:[%s1 + $0xb90] sm:$0xff]
    %v431 = vld [vmem:[%s1 + $0xb98] sm:$0xff]
    %v432 = vld [vmem:[%s1 + $0xba0] sm:$0xff]
    %v433 = vld [vmem:[%s1 + $0xba8] sm:$0xff]
    %v434 = vld [vmem:[%s1 + $0xbb0] sm:$0xff]
    %v435 = vld [vmem:[%s1 + $0xbb8] sm:$0xff]
    %v436 = vld [vmem:[%s1 + $0xbc0] sm:$0xff]
    %v437 = vld [vmem:[%s1 + $0xbc8] sm:$0xff]
    %v438 = vld [vmem:[%s1 + $0xbd0] sm:$0xff]
    %v439 = vld [vmem:[%s1 + $0xbd8] sm:$0xff]
    %v440 = vld [vmem:[%s1 + $0xbe0] sm:$0xff]
    %v441 = vld [vmem:[%s1 + $0xbe8] sm:$0xff]
    %v442 = vld [vmem:[%s1 + $0xbf0] sm:$0xff]
    %v443 = vld [vmem:[%s1 + $0xbf8] sm:$0xff]
    %v444 = vld [vmem:[%s1 + $0xc00] sm:$0xff]
    %v445 = vld [vmem:[%s1 + $0xc08] sm:$0xff]
    %v446 = vld [vmem:[%s1 + $0xc10] sm:$0xff]
    %v447 = vld [vmem:[%s1 + $0xc18] sm:$0xff]
    %v448 = vld [vmem:[%s1 + $0xc20] sm:$0xff]
    %v449 = vld [vmem:[%s1 + $0xc28] sm:$0xff]
    %v450 = vld [vmem:[%s1 + $0xc30] sm:$0xff]
    %v451 = vld [vmem:[%s1 + $0xc38] sm:$0xff]
    %v452 = vld [vmem:[%s1 + $0xc40] sm:$0xff]
    %v453 = vld [vmem:[%s1 + $0xc48] sm:$0xff]
    %v454 = vld [vmem:[%s1 + $0xc50] sm:$0xff]
    %v455 = vld [vmem:[%s1 + $0xc58] sm:$0xff]
    %v456 = vld [vmem:[%s1 + $0xc60] sm:$0xff]
    %v457 = vld [vmem:[%s1 + $0xc68] sm:$0xff]
    %v458 = vld [vmem:[%s1 + $0xc70] sm:$0xff]
    %v459 = vld [vmem:[%s1 + $0xc78] sm:$0xff]
    %v460 = vld [vmem:[%s1 + $0xc80] sm:$0xff]
    %v461 = vld [vmem:[%s1 + $0xc88] sm:$0xff]
    %v462 = vld [vmem:[%s1 + $0xc90] sm:$0xff]
    %v463 = vld [vmem:[%s1 + $0xc98] sm:$0xff]
    %v464 = vld [vmem:[%s1 + $0xca0] sm:$0xff]
    %v465 = vld [vmem:[%s1 + $0xca8] sm:$0xff]
    %v466 = vld [vmem:[%s1 + $0xcb0] sm:$0xff]
    %v467 = vld [vmem:[%s1 + $0xcb8] sm:$0xff]
    %v468 = vld [vmem:[%s1 + $0xcc0] sm:$0xff]
    %v469 = vld [vmem:[%s1 + $0xcc8] sm:$0xff]
    %v470 = vld [vmem:[%s1 + $0xcd0] sm:$0xff]
    %v471 = vld [vmem:[%s1 + $0xcd8] sm:$0xff]
    %v472 = vld [vmem:[%s1 + $0xce0] sm:$0xff]
    %v473 = vld [vmem:[%s1 + $0xce8] sm:$0xff]
    %v474 = vld [vmem:[%s1 + $0xcf0] sm:$0xff]
    %v475 = vld [vmem:[%s1 + $0xcf8] sm:$0xff]
    %v476 = vld [vmem:[%s1 + $0xd00] sm:$0xff]
    %v477 = vld [vmem:[%s1 + $0xd08] sm:$0xff]
    %v478 = vld [vmem:[%s1 + $0xd10] sm:$0xff]
    %v479 = vld [vmem:[%s1 + $0xd18] sm:$0xff]
    %v480 = vld [vmem:[%s1 + $0xd20] sm:$0xff]
    %v481 = vld [vmem:[%s1 + $0xd28] sm:$0xff]
    %v482 = vld [vmem:[%s1 + $0xd30] sm:$0xff]
    %v483 = vld [vmem:[%s1 + $0xd38] sm:$0xff]
    %v484 = vld [vmem:[%s1 + $0xd40] sm:$0xff]
    %v485 = vld [vmem:[%s1 + $0xd48] sm:$0xff]
    %v486 = vld [vmem:[%s1 + $0xd50] sm:$0xff]
    %v487 = vld [vmem:[%s1 + $0xd58] sm:$0xff]
    %v488 = vld [vmem:[%s1 + $0xd60] sm:$0xff]
    %v489 = vld [vmem:[%s1 + $0xd68] sm:$0xff]
    %v490 = vld [vmem:[%s1 + $0xd70] sm:$0xff]
    %v491 = vld [vmem:[%s1 + $0xd78] sm:$0xff]
    %v492 = vld [vmem:[%s1 + $0xd80] sm:$0xff]
    %v493 = vld [vmem:[%s1 + $0xd88] sm:$0xff]
    %v494 = vld [vmem:[%s1 + $0xd90] sm:$0xff]
    %v495 = vld [vmem:[%s1 + $0xd98] sm:$0xff]
    %v496 = vld [vmem:[%s1 + $0xda0] sm:$0xff]
    %v497 = vld [vmem:[%s1 + $0xda8] sm:$0xff]
    %v498 = vld [vmem:[%s1 + $0xdb0] sm:$0xff]
    %v499 = vld [vmem:[%s1 + $0xdb8] sm:$0xff]
    %v500 = vld [vmem:[%s1 + $0xdc0] sm:$0xff]
    %v501 = vld [vmem:[%s1 + $0xdc8] sm:$0xff]
    %v502 = vld [vmem:[%s1 + $0xdd0] sm:$0xff]
    %v503 = vld [vmem:[%s1 + $0xdd8] sm:$0xff]
    %v504 = vld [vmem:[%s1 + $0xde0] sm:$0xff]
    %v505 = vld [vmem:[%s1 + $0xde8] sm:$0xff]
    %v506 = vld [vmem:[%s1 + $0xdf0] sm:$0xff]
    %v507 = vld [vmem:[%s1 + $0xdf8] sm:$0xff]
    %v508 = vld [vmem:[%s1 + $0xe00] sm:$0xff]
    %v509 = vld [vmem:[%s1 + $0xe08] sm:$0xff]
    %v510 = vld [vmem:[%s1 + $0xe10] sm:$0xff]
    %v511 = vld [vmem:[%s1 + $0xe18] sm:$0xff]
    %v512 = vld [vmem:[%s1 + $0xe20] sm:$0xff]
    %v513 = vld [vmem:[%s1 + $0xe28] sm:$0xff]
    %v514 = vld [vmem:[%s1 + $0xe30] sm:$0xff]
    %v515 = vld [vmem:[%s1 + $0xe38] sm:$0xff]
    %v516 = vld [vmem:[%s1 + $0xe40] sm:$0xff]
    %v517 = vld [vmem:[%s1 + $0xe48] sm:$0xff]
    %v518 = vld [vmem:[%s1 + $0xe50] sm:$0xff]
    %v519 = vld [vmem:[%s1 + $0xe58] sm:$0xff]
    %v520 = vld [vmem:[%s1 + $0xe60] sm:$0xff]
    %v521 = vld [vmem:[%s1 + $0xe68] sm:$0xff]
    %v522 = vld [vmem:[%s1 + $0xe70] sm:$0xff]
    %v523 = vld [vmem:[%s1 + $0xe78] sm:$0xff]
    %v524 = vld [vmem:[%s1 + $0xe80] sm:$0xff]
    %v525 = vld [vmem:[%s1 + $0xe88] sm:$0xff]
    %v526 = vld [vmem:[%s1 + $0xe90] sm:$0xff]
    %v527 = vld [vmem:[%s1 + $0xe98] sm:$0xff]
    %v528 = vld [vmem:[%s1 + $0xea0] sm:$0xff]
    %v529 = vld [vmem:[%s1 + $0xea8] sm:$0xff]
    %v530 = vld [vmem:[%s1 + $0xeb0] sm:$0xff]
    %v531 = vld [vmem:[%s1 + $0xeb8] sm:$0xff]
    %v532 = vld [vmem:[%s1 + $0xec0] sm:$0xff]
    %v533 = vld [vmem:[%s1 + $0xec8] sm:$0xff]
    %v534 = vld [vmem:[%s1 + $0xed0] sm:$0xff]
    %v535 = vld [vmem:[%s1 + $0xed8] sm:$0xff]
    %v536 = vld [vmem:[%s1 + $0xee0] sm:$0xff]
    %v537 = vld [vmem:[%s1 + $0xee8] sm:$0xff]
    %v538 = vld [vmem:[%s1 + $0xef0] sm:$0xff]
    %v539 = vld [vmem:[%s1 + $0xef8] sm:$0xff]
    %v540 = vld [vmem:[%s1 + $0xf00] sm:$0xff]
    %v541 = vld [vmem:[%s1 + $0xf08] sm:$0xff]
    %v542 = vld [vmem:[%s1 + $0xf10] sm:$0xff]
    %v543 = vld [vmem:[%s1 + $0xf18] sm:$0xff]
    %v544 = vld [vmem:[%s1 + $0xf20] sm:$0xff]
    %v545 = vld [vmem:[%s1 + $0xf28] sm:$0xff]
    %v546 = vld [vmem:[%s1 + $0xf30] sm:$0xff]
    %v547 = vld [vmem:[%s1 + $0xf38] sm:$0xff]
    %v548 = vld [vmem:[%s1 + $0xf40] sm:$0xff]
    %v549 = vld [vmem:[%s1 + $0xf48] sm:$0xff]
    %v550 = vld [vmem:[%s1 + $0xf50] sm:$0xff]
    %v551 = vld [vmem:[%s1 + $0xf58] sm:$0xff]
    %v552 = vld [vmem:[%s1 + $0xf60] sm:$0xff]
    %v553 = vld [vmem:[%s1 + $0xf68] sm:$0xff]
    %v554 = vld [vmem:[%s1 + $0xf70] sm:$0xff]
    %v555 = vld [vmem:[%s1 + $0xf78] sm:$0xff]
    %v556 = vld [vmem:[%s1 + $0xf80] sm:$0xff]
    %v557 = vld [vmem:[%s1 + $0xf88] sm:$0xff]
    %v558 = vld [vmem:[%s1 + $0xf90] sm:$0xff]
    %v559 = vld [vmem:[%s1 + $0xf98] sm:$0xff]
    %v560 = vld [vmem:[%s1 + $0xfa0] sm:$0xff]
    %v561 = vld [vmem:[%s1 + $0xfa8] sm:$0xff]
    %v562 = vld [vmem:[%s1 + $0xfb0] sm:$0xff]
    %v563 = vld [vmem:[%s1 + $0xfb8] sm:$0xff]
    %v564 = vld [vmem:[%s1 + $0xfc0] sm:$0xff]
    %v565 = vld [vmem:[%s1 + $0xfc8] sm:$0xff]
    %v566 = vld [vmem:[%s1 + $0xfd0] sm:$0xff]
    %v567 = vld [vmem:[%s1 + $0xfd8] sm:$0xff]
    %v568 = vld [vmem:[%s1 + $0xfe0] sm:$0xff]
    %v569 = vld [vmem:[%s1 + $0xfe8] sm:$0xff]
    %v570 = vld [vmem:[%s1 + $0xff0] sm:$0xff]
    %v571 = vld [vmem:[%s1 + $0xff8] sm:$0xff]
    %v572 = vld [vmem:[%s1 + $0x1000] sm:$0xff]
    %v573 = vld [vmem:[%s1 + $0x1008] sm:$0xff]
    %v574 = vld [vmem:[%s1 + $0x1010] sm:$0xff]
    %v575 = vld [vmem:[%s1 + $0x1018] sm:$0xff]
    %v576 = vld [vmem:[%s1 + $0x1020] sm:$0xff]
    %v577 = vld [vmem:[%s1 + $0x1028] sm:$0xff]
    %v578 = vld [vmem:[%s1 + $0x1030] sm:$0xff]
    %v579 = vld [vmem:[%s1 + $0x1038] sm:$0xff]
    %v580 = vld [vmem:[%s1 + $0x1040] sm:$0xff]
    %v581 = vld [vmem:[%s1 + $0x1048] sm:$0xff]
    %v582 = vld [vmem:[%s1 + $0x1050] sm:$0xff]
    %v583 = vld [vmem:[%s1 + $0x1058] sm:$0xff]
    %v584 = vld [vmem:[%s1 + $0x1060] sm:$0xff]
    %v585 = vld [vmem:[%s1 + $0x1068] sm:$0xff]
    %v586 = vld [vmem:[%s1 + $0x1070] sm:$0xff]
    %v587 = vld [vmem:[%s1 + $0x1078] sm:$0xff]
    %v588 = vld [vmem:[%s1 + $0x1080] sm:$0xff]
    %v589 = vld [vmem:[%s1 + $0x1088] sm:$0xff]
    %v590 = vld [vmem:[%s1 + $0x1090] sm:$0xff]
    %v591 = vld [vmem:[%s1 + $0x1098] sm:$0xff]
    %v592 = vld [vmem:[%s1 + $0x10a0] sm:$0xff]
    %v593 = vld [vmem:[%s1 + $0x10a8] sm:$0xff]
    %v594 = vld [vmem:[%s1 + $0x10b0] sm:$0xff]
    %v595 = vld [vmem:[%s1 + $0x10b8] sm:$0xff]
    %v596 = vld [vmem:[%s1 + $0x10c0] sm:$0xff]
    %v597 = vld [vmem:[%s1 + $0x10c8] sm:$0xff]
    %v598 = vld [vmem:[%s1 + $0x10d0] sm:$0xff]
    %v599 = vld [vmem:[%s1 + $0x10d8] sm:$0xff]
    %v600 = vld [vmem:[%s1 + $0x10e0] sm:$0xff]
    %v601 = vld [vmem:[%s1 + $0x10e8] sm:$0xff]
    %v602 = vld [vmem:[%s1 + $0x10f0] sm:$0xff]
    %v603 = vld [vmem:[%s1 + $0x10f8] sm:$0xff]
    %v604 = vld [vmem:[%s1 + $0x1100] sm:$0xff]
    %v605 = vld [vmem:[%s1 + $0x1108] sm:$0xff]
    %v606 = vld [vmem:[%s1 + $0x1110] sm:$0xff]
    %v607 = vld [vmem:[%s1 + $0x1118] sm:$0xff]
    %v608 = vld [vmem:[%s1 + $0x1120] sm:$0xff]
    %v609 = vld [vmem:[%s1 + $0x1128] sm:$0xff]
    %v610 = vld [vmem:[%s1 + $0x1130] sm:$0xff]
    %v611 = vld [vmem:[%s1 + $0x1138] sm:$0xff]
    %v612 = vld [vmem:[%s1 + $0x1140] sm:$0xff]
    %v613 = vld [vmem:[%s1 + $0x1148] sm:$0xff]
    %v614 = vld [vmem:[%s1 + $0x1150] sm:$0xff]
    %v615 = vld [vmem:[%s1 + $0x1158] sm:$0xff]
    %v616 = vld [vmem:[%s1 + $0x1160] sm:$0xff]
    %v617 = vld [vmem:[%s1 + $0x1168] sm:$0xff]
    %v618 = vld [vmem:[%s1 + $0x1170] sm:$0xff]
    %v619 = vld [vmem:[%s1 + $0x1178] sm:$0xff]
    %v620 = vld [vmem:[%s1 + $0x1180] sm:$0xff]
    %v621 = vld [vmem:[%s1 + $0x1188] sm:$0xff]
    %v622 = vld [vmem:[%s1 + $0x1190] sm:$0xff]
    %v623 = vld [vmem:[%s1 + $0x1198] sm:$0xff]
    %v624 = vld [vmem:[%s1 + $0x11a0] sm:$0xff]
    %v625 = vld [vmem:[%s1 + $0x11a8] sm:$0xff]
    %v626 = vld [vmem:[%s1 + $0x11b0] sm:$0xff]
    %v627 = vld [vmem:[%s1 + $0x11b8] sm:$0xff]
    %v628 = vld [vmem:[%s1 + $0x11c0] sm:$0xff]
    %v629 = vld [vmem:[%s1 + $0x11c8] sm:$0xff]
    %v630 = vld [vmem:[%s1 + $0x11d0] sm:$0xff]
    %v631 = vld [vmem:[%s1 + $0x11d8] sm:$0xff]
    %v632 = vld [vmem:[%s1 + $0x11e0] sm:$0xff]
    %v633 = vld [vmem:[%s1 + $0x11e8] sm:$0xff]
    %v634 = vld [vmem:[%s1 + $0x11f0] sm:$0xff]
    %v635 = vld [vmem:[%s1 + $0x11f8] sm:$0xff]
    %v636 = vld [vmem:[%s1 + $0x1200] sm:$0xff]
    %v637 = vld [vmem:[%s1 + $0x1208] sm:$0xff]
    %v638 = vld [vmem:[%s1 + $0x1210] sm:$0xff]
    %v639 = vld [vmem:[%s1 + $0x1218] sm:$0xff]
    %v640 = vld [vmem:[%s1 + $0x1220] sm:$0xff]
    %v641 = vld [vmem:[%s1 + $0x1228] sm:$0xff]
    %v642 = vld [vmem:[%s1 + $0x1230] sm:$0xff]
    %v643 = vld [vmem:[%s1 + $0x1238] sm:$0xff]
    %v644 = vld [vmem:[%s1 + $0x1240] sm:$0xff]
    %v645 = vld [vmem:[%s1 + $0x1248] sm:$0xff]
    %v646 = vld [vmem:[%s1 + $0x1250] sm:$0xff]
    %v647 = vld [vmem:[%s1 + $0x1258] sm:$0xff]
    %v648 = vld [vmem:[%s1 + $0x1260] sm:$0xff]
    %v649 = vld [vmem:[%s1 + $0x1268] sm:$0xff]
    %v650 = vld [vmem:[%s1 + $0x1270] sm:$0xff]
    %v651 = vld [vmem:[%s1 + $0x1278] sm:$0xff]
    %v652 = vld [vmem:[%s1 + $0x1280] sm:$0xff]
    %v653 = vld [vmem:[%s1 + $0x1288] sm:$0xff]
    %v654 = vld [vmem:[%s1 + $0x1290] sm:$0xff]
    %v655 = vld [vmem:[%s1 + $0x1298] sm:$0xff]
    %v656 = vld [vmem:[%s1 + $0x12a0] sm:$0xff]
    %v657 = vld [vmem:[%s1 + $0x12a8] sm:$0xff]
    %v658 = vld [vmem:[%s1 + $0x12b0] sm:$0xff]
    %v659 = vld [vmem:[%s1 + $0x12b8] sm:$0xff]
    %v660 = vld [vmem:[%s1 + $0x12c0] sm:$0xff]
    %v661 = vld [vmem:[%s1 + $0x12c8] sm:$0xff]
    %v662 = vld [vmem:[%s1 + $0x12d0] sm:$0xff]
    %v663 = vld [vmem:[%s1 + $0x12d8] sm:$0xff]
    %v664 = vld [vmem:[%s1 + $0x12e0] sm:$0xff]
    %v665 = vld [vmem:[%s1 + $0x12e8] sm:$0xff]
    %v666 = vld [vmem:[%s1 + $0x12f0] sm:$0xff]
    %v667 = vld [vmem:[%s1 + $0x12f8] sm:$0xff]
    %v668 = vld [vmem:[%s2] sm:$0x1]
    %v670 = vperm.slane %v668, 0
    %672 = vmatpush.msra.mxu0 %v75
    %673 = vmatpush.msra.mxu0 %v74
    %674 = vmatpush.msra.mxu0 %v73
    %675 = vmatpush.msra.mxu0 %v72
    %676 = vmatpush.msra.mxu0 %v71
    %677 = vmatpush.msra.mxu0 %v70
    %678 = vmatpush.msra.mxu0 %v69
    %679 = vmatpush.msra.mxu0 %v68
    %680 = vmatpush.msra.mxu0 %v67
    %681 = vmatpush.msra.mxu0 %v66
    %682 = vmatpush.msra.mxu0 %v65
    %683 = vmatpush.msra.mxu0 %v64
    %684 = vmatpush.msra.mxu0 %v63
    %685 = vmatpush.msra.mxu0 %v62
    %686 = vmatpush.msra.mxu0 %v61
    %687 = vmatpush.msra.mxu0 %v60
    %688 = vmatmul.f32.gmra.mxu0 %v22
    %v689 = vpop.f32.mrf.mxu0
    %v690 = vadd.f32 %v670, %v689
    %691 = vdwg.mxu0
    %692 = vmatpush.msra.mxu0 %v91
    %693 = vmatpush.msra.mxu0 %v90
    %694 = vmatpush.msra.mxu0 %v89
    %695 = vmatpush.msra.mxu0 %v88
    %696 = vmatpush.msra.mxu0 %v87
    %697 = vmatpush.msra.mxu0 %v86
    %698 = vmatpush.msra.mxu0 %v85
    %699 = vmatpush.msra.mxu0 %v84
    %700 = vmatpush.msra.mxu0 %v83
    %701 = vmatpush.msra.mxu0 %v82
    %702 = vmatpush.msra.mxu0 %v81
    %703 = vmatpush.msra.mxu0 %v80
    %704 = vmatpush.msra.mxu0 %v79
    %705 = vmatpush.msra.mxu0 %v78
    %706 = vmatpush.msra.mxu0 %v77
    %707 = vmatpush.msra.mxu0 %v76
    %708 = vmatmul.f32.gmra.mxu0 %v23
    %v709 = vpop.f32.mrf.mxu0
    %v710 = vadd.f32 %v690, %v709
    %711 = vdwg.mxu0
    %712 = vmatpush.msra.mxu0 %v107
    %713 = vmatpush.msra.mxu0 %v106
    %714 = vmatpush.msra.mxu0 %v105
    %715 = vmatpush.msra.mxu0 %v104
    %716 = vmatpush.msra.mxu0 %v103
    %717 = vmatpush.msra.mxu0 %v102
    %718 = vmatpush.msra.mxu0 %v101
    %719 = vmatpush.msra.mxu0 %v100
    %720 = vmatpush.msra.mxu0 %v99
    %721 = vmatpush.msra.mxu0 %v98
    %722 = vmatpush.msra.mxu0 %v97
    %723 = vmatpush.msra.mxu0 %v96
    %724 = vmatpush.msra.mxu0 %v95
    %725 = vmatpush.msra.mxu0 %v94
    %726 = vmatpush.msra.mxu0 %v93
    %727 = vmatpush.msra.mxu0 %v92
    %728 = vmatmul.f32.gmra.mxu0 %v24
    %v729 = vpop.f32.mrf.mxu0
    %v730 = vadd.f32 %v710, %v729
    %731 = vdwg.mxu0
    %732 = vmatpush.msra.mxu0 %v123
    %733 = vmatpush.msra.mxu0 %v122
    %734 = vmatpush.msra.mxu0 %v121
    %735 = vmatpush.msra.mxu0 %v120
    %736 = vmatpush.msra.mxu0 %v119
    %737 = vmatpush.msra.mxu0 %v118
    %738 = vmatpush.msra.mxu0 %v117
    %739 = vmatpush.msra.mxu0 %v116
    %740 = vmatpush.msra.mxu0 %v115
    %741 = vmatpush.msra.mxu0 %v114
    %742 = vmatpush.msra.mxu0 %v113
    %743 = vmatpush.msra.mxu0 %v112
    %744 = vmatpush.msra.mxu0 %v111
    %745 = vmatpush.msra.mxu0 %v110
    %746 = vmatpush.msra.mxu0 %v109
    %747 = vmatpush.msra.mxu0 %v108
    %748 = vmatmul.f32.gmra.mxu0 %v25
    %v749 = vpop.f32.mrf.mxu0
    %v750 = vadd.f32 %v730, %v749
    %751 = vdwg.mxu0
    %752 = vmatpush.msra.mxu0 %v139
    %753 = vmatpush.msra.mxu0 %v138
    %754 = vmatpush.msra.mxu0 %v137
    %755 = vmatpush.msra.mxu0 %v136
    %756 = vmatpush.msra.mxu0 %v135
    %757 = vmatpush.msra.mxu0 %v134
    %758 = vmatpush.msra.mxu0 %v133
    %759 = vmatpush.msra.mxu0 %v132
    %760 = vmatpush.msra.mxu0 %v131
    %761 = vmatpush.msra.mxu0 %v130
    %762 = vmatpush.msra.mxu0 %v129
    %763 = vmatpush.msra.mxu0 %v128
    %764 = vmatpush.msra.mxu0 %v127
    %765 = vmatpush.msra.mxu0 %v126
    %766 = vmatpush.msra.mxu0 %v125
    %767 = vmatpush.msra.mxu0 %v124
    %768 = vmatmul.f32.gmra.mxu0 %v26
    %v769 = vpop.f32.mrf.mxu0
    %v770 = vadd.f32 %v750, %v769
    %771 = vdwg.mxu0
    %772 = vmatpush.msra.mxu0 %v155
    %773 = vmatpush.msra.mxu0 %v154
    %774 = vmatpush.msra.mxu0 %v153
    %775 = vmatpush.msra.mxu0 %v152
    %776 = vmatpush.msra.mxu0 %v151
    %777 = vmatpush.msra.mxu0 %v150
    %778 = vmatpush.msra.mxu0 %v149
    %779 = vmatpush.msra.mxu0 %v148
    %780 = vmatpush.msra.mxu0 %v147
    %781 = vmatpush.msra.mxu0 %v146
    %782 = vmatpush.msra.mxu0 %v145
    %783 = vmatpush.msra.mxu0 %v144
    %784 = vmatpush.msra.mxu0 %v143
    %785 = vmatpush.msra.mxu0 %v142
    %786 = vmatpush.msra.mxu0 %v141
    %787 = vmatpush.msra.mxu0 %v140
    %788 = vmatmul.f32.gmra.mxu0 %v27
    %v789 = vpop.f32.mrf.mxu0
    %v790 = vadd.f32 %v770, %v789
    %791 = vdwg.mxu0
    %792 = vmatpush.msra.mxu0 %v171
    %793 = vmatpush.msra.mxu0 %v170
    %794 = vmatpush.msra.mxu0 %v169
    %795 = vmatpush.msra.mxu0 %v168
    %796 = vmatpush.msra.mxu0 %v167
    %797 = vmatpush.msra.mxu0 %v166
    %798 = vmatpush.msra.mxu0 %v165
    %799 = vmatpush.msra.mxu0 %v164
    %800 = vmatpush.msra.mxu0 %v163
    %801 = vmatpush.msra.mxu0 %v162
    %802 = vmatpush.msra.mxu0 %v161
    %803 = vmatpush.msra.mxu0 %v160
    %804 = vmatpush.msra.mxu0 %v159
    %805 = vmatpush.msra.mxu0 %v158
    %806 = vmatpush.msra.mxu0 %v157
    %807 = vmatpush.msra.mxu0 %v156
    %808 = vmatmul.f32.gmra.mxu0 %v28
    %v809 = vpop.f32.mrf.mxu0
    %v810 = vadd.f32 %v790, %v809
    %811 = vdwg.mxu0
    %812 = vmatpush.msra.mxu0 %v187
    %813 = vmatpush.msra.mxu0 %v186
    %814 = vmatpush.msra.mxu0 %v185
    %815 = vmatpush.msra.mxu0 %v184
    %816 = vmatpush.msra.mxu0 %v183
    %817 = vmatpush.msra.mxu0 %v182
    %818 = vmatpush.msra.mxu0 %v181
    %819 = vmatpush.msra.mxu0 %v180
    %820 = vmatpush.msra.mxu0 %v179
    %821 = vmatpush.msra.mxu0 %v178
    %822 = vmatpush.msra.mxu0 %v177
    %823 = vmatpush.msra.mxu0 %v176
    %824 = vmatpush.msra.mxu0 %v175
    %825 = vmatpush.msra.mxu0 %v174
    %826 = vmatpush.msra.mxu0 %v173
    %827 = vmatpush.msra.mxu0 %v172
    %828 = vmatmul.f32.gmra.mxu0 %v29
    %v829 = vpop.f32.mrf.mxu0
    %v830 = vadd.f32 %v810, %v829
    %831 = vdwg.mxu0
    %832 = vmatpush.msra.mxu0 %v203
    %833 = vmatpush.msra.mxu0 %v202
    %834 = vmatpush.msra.mxu0 %v201
    %835 = vmatpush.msra.mxu0 %v200
    %836 = vmatpush.msra.mxu0 %v199
    %837 = vmatpush.msra.mxu0 %v198
    %838 = vmatpush.msra.mxu0 %v197
    %839 = vmatpush.msra.mxu0 %v196
    %840 = vmatpush.msra.mxu0 %v195
    %841 = vmatpush.msra.mxu0 %v194
    %842 = vmatpush.msra.mxu0 %v193
    %843 = vmatpush.msra.mxu0 %v192
    %844 = vmatpush.msra.mxu0 %v191
    %845 = vmatpush.msra.mxu0 %v190
    %846 = vmatpush.msra.mxu0 %v189
    %847 = vmatpush.msra.mxu0 %v188
    %848 = vmatmul.f32.gmra.mxu0 %v30
    %v849 = vpop.f32.mrf.mxu0
    %v850 = vadd.f32 %v830, %v849
    %851 = vdwg.mxu0
    %852 = vmatpush.msra.mxu0 %v219
    %853 = vmatpush.msra.mxu0 %v218
    %854 = vmatpush.msra.mxu0 %v217
    %855 = vmatpush.msra.mxu0 %v216
    %856 = vmatpush.msra.mxu0 %v215
    %857 = vmatpush.msra.mxu0 %v214
    %858 = vmatpush.msra.mxu0 %v213
    %859 = vmatpush.msra.mxu0 %v212
    %860 = vmatpush.msra.mxu0 %v211
    %861 = vmatpush.msra.mxu0 %v210
    %862 = vmatpush.msra.mxu0 %v209
    %863 = vmatpush.msra.mxu0 %v208
    %864 = vmatpush.msra.mxu0 %v207
    %865 = vmatpush.msra.mxu0 %v206
    %866 = vmatpush.msra.mxu0 %v205
    %867 = vmatpush.msra.mxu0 %v204
    %868 = vmatmul.f32.gmra.mxu0 %v31
    %v869 = vpop.f32.mrf.mxu0
    %v870 = vadd.f32 %v850, %v869
    %871 = vdwg.mxu0
    %872 = vmatpush.msra.mxu0 %v235
    %873 = vmatpush.msra.mxu0 %v234
    %874 = vmatpush.msra.mxu0 %v233
    %875 = vmatpush.msra.mxu0 %v232
    %876 = vmatpush.msra.mxu0 %v231
    %877 = vmatpush.msra.mxu0 %v230
    %878 = vmatpush.msra.mxu0 %v229
    %879 = vmatpush.msra.mxu0 %v228
    %880 = vmatpush.msra.mxu0 %v227
    %881 = vmatpush.msra.mxu0 %v226
    %882 = vmatpush.msra.mxu0 %v225
    %883 = vmatpush.msra.mxu0 %v224
    %884 = vmatpush.msra.mxu0 %v223
    %885 = vmatpush.msra.mxu0 %v222
    %886 = vmatpush.msra.mxu0 %v221
    %887 = vmatpush.msra.mxu0 %v220
    %888 = vmatmul.f32.gmra.mxu0 %v32
    %v889 = vpop.f32.mrf.mxu0
    %v890 = vadd.f32 %v870, %v889
    %891 = vdwg.mxu0
    %892 = vmatpush.msra.mxu0 %v251
    %893 = vmatpush.msra.mxu0 %v250
    %894 = vmatpush.msra.mxu0 %v249
    %895 = vmatpush.msra.mxu0 %v248
    %896 = vmatpush.msra.mxu0 %v247
    %897 = vmatpush.msra.mxu0 %v246
    %898 = vmatpush.msra.mxu0 %v245
    %899 = vmatpush.msra.mxu0 %v244
    %900 = vmatpush.msra.mxu0 %v243
    %901 = vmatpush.msra.mxu0 %v242
    %902 = vmatpush.msra.mxu0 %v241
    %903 = vmatpush.msra.mxu0 %v240
    %904 = vmatpush.msra.mxu0 %v239
    %905 = vmatpush.msra.mxu0 %v238
    %906 = vmatpush.msra.mxu0 %v237
    %907 = vmatpush.msra.mxu0 %v236
    %908 = vmatmul.f32.gmra.mxu0 %v33
    %v909 = vpop.f32.mrf.mxu0
    %v910 = vadd.f32 %v890, %v909
    %911 = vdwg.mxu0
    %912 = vmatpush.msra.mxu0 %v267
    %913 = vmatpush.msra.mxu0 %v266
    %914 = vmatpush.msra.mxu0 %v265
    %915 = vmatpush.msra.mxu0 %v264
    %916 = vmatpush.msra.mxu0 %v263
    %917 = vmatpush.msra.mxu0 %v262
    %918 = vmatpush.msra.mxu0 %v261
    %919 = vmatpush.msra.mxu0 %v260
    %920 = vmatpush.msra.mxu0 %v259
    %921 = vmatpush.msra.mxu0 %v258
    %922 = vmatpush.msra.mxu0 %v257
    %923 = vmatpush.msra.mxu0 %v256
    %924 = vmatpush.msra.mxu0 %v255
    %925 = vmatpush.msra.mxu0 %v254
    %926 = vmatpush.msra.mxu0 %v253
    %927 = vmatpush.msra.mxu0 %v252
    %928 = vmatmul.f32.gmra.mxu0 %v34
    %v929 = vpop.f32.mrf.mxu0
    %v930 = vadd.f32 %v910, %v929
    %931 = vdwg.mxu0
    %932 = vmatpush.msra.mxu0 %v283
    %933 = vmatpush.msra.mxu0 %v282
    %934 = vmatpush.msra.mxu0 %v281
    %935 = vmatpush.msra.mxu0 %v280
    %936 = vmatpush.msra.mxu0 %v279
    %937 = vmatpush.msra.mxu0 %v278
    %938 = vmatpush.msra.mxu0 %v277
    %939 = vmatpush.msra.mxu0 %v276
    %940 = vmatpush.msra.mxu0 %v275
    %941 = vmatpush.msra.mxu0 %v274
    %942 = vmatpush.msra.mxu0 %v273
    %943 = vmatpush.msra.mxu0 %v272
    %944 = vmatpush.msra.mxu0 %v271
    %945 = vmatpush.msra.mxu0 %v270
    %946 = vmatpush.msra.mxu0 %v269
    %947 = vmatpush.msra.mxu0 %v268
    %948 = vmatmul.f32.gmra.mxu0 %v35
    %v949 = vpop.f32.mrf.mxu0
    %v950 = vadd.f32 %v930, %v949
    %951 = vdwg.mxu0
    %952 = vmatpush.msra.mxu0 %v299
    %953 = vmatpush.msra.mxu0 %v298
    %954 = vmatpush.msra.mxu0 %v297
    %955 = vmatpush.msra.mxu0 %v296
    %956 = vmatpush.msra.mxu0 %v295
    %957 = vmatpush.msra.mxu0 %v294
    %958 = vmatpush.msra.mxu0 %v293
    %959 = vmatpush.msra.mxu0 %v292
    %960 = vmatpush.msra.mxu0 %v291
    %961 = vmatpush.msra.mxu0 %v290
    %962 = vmatpush.msra.mxu0 %v289
    %963 = vmatpush.msra.mxu0 %v288
    %964 = vmatpush.msra.mxu0 %v287
    %965 = vmatpush.msra.mxu0 %v286
    %966 = vmatpush.msra.mxu0 %v285
    %967 = vmatpush.msra.mxu0 %v284
    %968 = vmatmul.f32.gmra.mxu0 %v36
    %v969 = vpop.f32.mrf.mxu0
    %v970 = vadd.f32 %v950, %v969
    %971 = vdwg.mxu0
    %972 = vmatpush.msra.mxu0 %v315
    %973 = vmatpush.msra.mxu0 %v314
    %974 = vmatpush.msra.mxu0 %v313
    %975 = vmatpush.msra.mxu0 %v312
    %976 = vmatpush.msra.mxu0 %v311
    %977 = vmatpush.msra.mxu0 %v310
    %978 = vmatpush.msra.mxu0 %v309
    %979 = vmatpush.msra.mxu0 %v308
    %980 = vmatpush.msra.mxu0 %v307
    %981 = vmatpush.msra.mxu0 %v306
    %982 = vmatpush.msra.mxu0 %v305
    %983 = vmatpush.msra.mxu0 %v304
    %984 = vmatpush.msra.mxu0 %v303
    %985 = vmatpush.msra.mxu0 %v302
    %986 = vmatpush.msra.mxu0 %v301
    %987 = vmatpush.msra.mxu0 %v300
    %988 = vmatmul.f32.gmra.mxu0 %v37
    %v989 = vpop.f32.mrf.mxu0
    %v990 = vadd.f32 %v970, %v989
    %991 = vdwg.mxu0
    %992 = vmatpush.msra.mxu0 %v331
    %993 = vmatpush.msra.mxu0 %v330
    %994 = vmatpush.msra.mxu0 %v329
    %995 = vmatpush.msra.mxu0 %v328
    %996 = vmatpush.msra.mxu0 %v327
    %997 = vmatpush.msra.mxu0 %v326
    %998 = vmatpush.msra.mxu0 %v325
    %999 = vmatpush.msra.mxu0 %v324
    %1000 = vmatpush.msra.mxu0 %v323
    %1001 = vmatpush.msra.mxu0 %v322
    %1002 = vmatpush.msra.mxu0 %v321
    %1003 = vmatpush.msra.mxu0 %v320
    %1004 = vmatpush.msra.mxu0 %v319
    %1005 = vmatpush.msra.mxu0 %v318
    %1006 = vmatpush.msra.mxu0 %v317
    %1007 = vmatpush.msra.mxu0 %v316
    %1008 = vmatmul.f32.gmra.mxu0 %v38
    %v1009 = vpop.f32.mrf.mxu0
    %v1010 = vadd.f32 %v990, %v1009
    %1011 = vdwg.mxu0
    %1012 = vmatpush.msra.mxu0 %v347
    %1013 = vmatpush.msra.mxu0 %v346
    %1014 = vmatpush.msra.mxu0 %v345
    %1015 = vmatpush.msra.mxu0 %v344
    %1016 = vmatpush.msra.mxu0 %v343
    %1017 = vmatpush.msra.mxu0 %v342
    %1018 = vmatpush.msra.mxu0 %v341
    %1019 = vmatpush.msra.mxu0 %v340
    %1020 = vmatpush.msra.mxu0 %v339
    %1021 = vmatpush.msra.mxu0 %v338
    %1022 = vmatpush.msra.mxu0 %v337
    %1023 = vmatpush.msra.mxu0 %v336
    %1024 = vmatpush.msra.mxu0 %v335
    %1025 = vmatpush.msra.mxu0 %v334
    %1026 = vmatpush.msra.mxu0 %v333
    %1027 = vmatpush.msra.mxu0 %v332
    %1028 = vmatmul.f32.gmra.mxu0 %v39
    %v1029 = vpop.f32.mrf.mxu0
    %v1030 = vadd.f32 %v1010, %v1029
    %1031 = vdwg.mxu0
    %1032 = vmatpush.msra.mxu0 %v363
    %1033 = vmatpush.msra.mxu0 %v362
    %1034 = vmatpush.msra.mxu0 %v361
    %1035 = vmatpush.msra.mxu0 %v360
    %1036 = vmatpush.msra.mxu0 %v359
    %1037 = vmatpush.msra.mxu0 %v358
    %1038 = vmatpush.msra.mxu0 %v357
    %1039 = vmatpush.msra.mxu0 %v356
    %1040 = vmatpush.msra.mxu0 %v355
    %1041 = vmatpush.msra.mxu0 %v354
    %1042 = vmatpush.msra.mxu0 %v353
    %1043 = vmatpush.msra.mxu0 %v352
    %1044 = vmatpush.msra.mxu0 %v351
    %1045 = vmatpush.msra.mxu0 %v350
    %1046 = vmatpush.msra.mxu0 %v349
    %1047 = vmatpush.msra.mxu0 %v348
    %1048 = vmatmul.f32.gmra.mxu0 %v40
    %v1049 = vpop.f32.mrf.mxu0
    %v1050 = vadd.f32 %v1030, %v1049
    %1051 = vdwg.mxu0
    %1052 = vmatpush.msra.mxu0 %v379
    %1053 = vmatpush.msra.mxu0 %v378
    %1054 = vmatpush.msra.mxu0 %v377
    %1055 = vmatpush.msra.mxu0 %v376
    %1056 = vmatpush.msra.mxu0 %v375
    %1057 = vmatpush.msra.mxu0 %v374
    %1058 = vmatpush.msra.mxu0 %v373
    %1059 = vmatpush.msra.mxu0 %v372
    %1060 = vmatpush.msra.mxu0 %v371
    %1061 = vmatpush.msra.mxu0 %v370
    %1062 = vmatpush.msra.mxu0 %v369
    %1063 = vmatpush.msra.mxu0 %v368
    %1064 = vmatpush.msra.mxu0 %v367
    %1065 = vmatpush.msra.mxu0 %v366
    %1066 = vmatpush.msra.mxu0 %v365
    %1067 = vmatpush.msra.mxu0 %v364
    %1068 = vmatmul.f32.gmra.mxu0 %v41
    %v1069 = vpop.f32.mrf.mxu0
    %v1070 = vadd.f32 %v1050, %v1069
    %1071 = vdwg.mxu0
    %1072 = vmatpush.msra.mxu0 %v395
    %1073 = vmatpush.msra.mxu0 %v394
    %1074 = vmatpush.msra.mxu0 %v393
    %1075 = vmatpush.msra.mxu0 %v392
    %1076 = vmatpush.msra.mxu0 %v391
    %1077 = vmatpush.msra.mxu0 %v390
    %1078 = vmatpush.msra.mxu0 %v389
    %1079 = vmatpush.msra.mxu0 %v388
    %1080 = vmatpush.msra.mxu0 %v387
    %1081 = vmatpush.msra.mxu0 %v386
    %1082 = vmatpush.msra.mxu0 %v385
    %1083 = vmatpush.msra.mxu0 %v384
    %1084 = vmatpush.msra.mxu0 %v383
    %1085 = vmatpush.msra.mxu0 %v382
    %1086 = vmatpush.msra.mxu0 %v381
    %1087 = vmatpush.msra.mxu0 %v380
    %1088 = vmatmul.f32.gmra.mxu0 %v42
    %v1089 = vpop.f32.mrf.mxu0
    %v1090 = vadd.f32 %v1070, %v1089
    %1091 = vdwg.mxu0
    %1092 = vmatpush.msra.mxu0 %v411
    %1093 = vmatpush.msra.mxu0 %v410
    %1094 = vmatpush.msra.mxu0 %v409
    %1095 = vmatpush.msra.mxu0 %v408
    %1096 = vmatpush.msra.mxu0 %v407
    %1097 = vmatpush.msra.mxu0 %v406
    %1098 = vmatpush.msra.mxu0 %v405
    %1099 = vmatpush.msra.mxu0 %v404
    %1100 = vmatpush.msra.mxu0 %v403
    %1101 = vmatpush.msra.mxu0 %v402
    %1102 = vmatpush.msra.mxu0 %v401
    %1103 = vmatpush.msra.mxu0 %v400
    %1104 = vmatpush.msra.mxu0 %v399
    %1105 = vmatpush.msra.mxu0 %v398
    %1106 = vmatpush.msra.mxu0 %v397
    %1107 = vmatpush.msra.mxu0 %v396
    %1108 = vmatmul.f32.gmra.mxu0 %v43
    %v1109 = vpop.f32.mrf.mxu0
    %v1110 = vadd.f32 %v1090, %v1109
    %1111 = vdwg.mxu0
    %1112 = vmatpush.msra.mxu0 %v427
    %1113 = vmatpush.msra.mxu0 %v426
    %1114 = vmatpush.msra.mxu0 %v425
    %1115 = vmatpush.msra.mxu0 %v424
    %1116 = vmatpush.msra.mxu0 %v423
    %1117 = vmatpush.msra.mxu0 %v422
    %1118 = vmatpush.msra.mxu0 %v421
    %1119 = vmatpush.msra.mxu0 %v420
    %1120 = vmatpush.msra.mxu0 %v419
    %1121 = vmatpush.msra.mxu0 %v418
    %1122 = vmatpush.msra.mxu0 %v417
    %1123 = vmatpush.msra.mxu0 %v416
    %1124 = vmatpush.msra.mxu0 %v415
    %1125 = vmatpush.msra.mxu0 %v414
    %1126 = vmatpush.msra.mxu0 %v413
    %1127 = vmatpush.msra.mxu0 %v412
    %1128 = vmatmul.f32.gmra.mxu0 %v44
    %v1129 = vpop.f32.mrf.mxu0
    %v1130 = vadd.f32 %v1110, %v1129
    %1131 = vdwg.mxu0
    %1132 = vmatpush.msra.mxu0 %v443
    %1133 = vmatpush.msra.mxu0 %v442
    %1134 = vmatpush.msra.mxu0 %v441
    %1135 = vmatpush.msra.mxu0 %v440
    %1136 = vmatpush.msra.mxu0 %v439
    %1137 = vmatpush.msra.mxu0 %v438
    %1138 = vmatpush.msra.mxu0 %v437
    %1139 = vmatpush.msra.mxu0 %v436
    %1140 = vmatpush.msra.mxu0 %v435
    %1141 = vmatpush.msra.mxu0 %v434
    %1142 = vmatpush.msra.mxu0 %v433
    %1143 = vmatpush.msra.mxu0 %v432
    %1144 = vmatpush.msra.mxu0 %v431
    %1145 = vmatpush.msra.mxu0 %v430
    %1146 = vmatpush.msra.mxu0 %v429
    %1147 = vmatpush.msra.mxu0 %v428
    %1148 = vmatmul.f32.gmra.mxu0 %v45
    %v1149 = vpop.f32.mrf.mxu0
    %v1150 = vadd.f32 %v1130, %v1149
    %1151 = vdwg.mxu0
    %1152 = vmatpush.msra.mxu0 %v459
    %1153 = vmatpush.msra.mxu0 %v458
    %1154 = vmatpush.msra.mxu0 %v457
    %1155 = vmatpush.msra.mxu0 %v456
    %1156 = vmatpush.msra.mxu0 %v455
    %1157 = vmatpush.msra.mxu0 %v454
    %1158 = vmatpush.msra.mxu0 %v453
    %1159 = vmatpush.msra.mxu0 %v452
    %1160 = vmatpush.msra.mxu0 %v451
    %1161 = vmatpush.msra.mxu0 %v450
    %1162 = vmatpush.msra.mxu0 %v449
    %1163 = vmatpush.msra.mxu0 %v448
    %1164 = vmatpush.msra.mxu0 %v447
    %1165 = vmatpush.msra.mxu0 %v446
    %1166 = vmatpush.msra.mxu0 %v445
    %1167 = vmatpush.msra.mxu0 %v444
    %1168 = vmatmul.f32.gmra.mxu0 %v46
    %v1169 = vpop.f32.mrf.mxu0
    %v1170 = vadd.f32 %v1150, %v1169
    %1171 = vdwg.mxu0
    %1172 = vmatpush.msra.mxu0 %v475
    %1173 = vmatpush.msra.mxu0 %v474
    %1174 = vmatpush.msra.mxu0 %v473
    %1175 = vmatpush.msra.mxu0 %v472
    %1176 = vmatpush.msra.mxu0 %v471
    %1177 = vmatpush.msra.mxu0 %v470
    %1178 = vmatpush.msra.mxu0 %v469
    %1179 = vmatpush.msra.mxu0 %v468
    %1180 = vmatpush.msra.mxu0 %v467
    %1181 = vmatpush.msra.mxu0 %v466
    %1182 = vmatpush.msra.mxu0 %v465
    %1183 = vmatpush.msra.mxu0 %v464
    %1184 = vmatpush.msra.mxu0 %v463
    %1185 = vmatpush.msra.mxu0 %v462
    %1186 = vmatpush.msra.mxu0 %v461
    %1187 = vmatpush.msra.mxu0 %v460
    %1188 = vmatmul.f32.gmra.mxu0 %v47
    %v1189 = vpop.f32.mrf.mxu0
    %v1190 = vadd.f32 %v1170, %v1189
    %1191 = vdwg.mxu0
    %1192 = vmatpush.msra.mxu0 %v491
    %1193 = vmatpush.msra.mxu0 %v490
    %1194 = vmatpush.msra.mxu0 %v489
    %1195 = vmatpush.msra.mxu0 %v488
    %1196 = vmatpush.msra.mxu0 %v487
    %1197 = vmatpush.msra.mxu0 %v486
    %1198 = vmatpush.msra.mxu0 %v485
    %1199 = vmatpush.msra.mxu0 %v484
    %1200 = vmatpush.msra.mxu0 %v483
    %1201 = vmatpush.msra.mxu0 %v482
    %1202 = vmatpush.msra.mxu0 %v481
    %1203 = vmatpush.msra.mxu0 %v480
    %1204 = vmatpush.msra.mxu0 %v479
    %1205 = vmatpush.msra.mxu0 %v478
    %1206 = vmatpush.msra.mxu0 %v477
    %1207 = vmatpush.msra.mxu0 %v476
    %1208 = vmatmul.f32.gmra.mxu0 %v48
    %v1209 = vpop.f32.mrf.mxu0
    %v1210 = vadd.f32 %v1190, %v1209
    %1211 = vdwg.mxu0
    %1212 = vmatpush.msra.mxu0 %v507
    %1213 = vmatpush.msra.mxu0 %v506
    %1214 = vmatpush.msra.mxu0 %v505
    %1215 = vmatpush.msra.mxu0 %v504
    %1216 = vmatpush.msra.mxu0 %v503
    %1217 = vmatpush.msra.mxu0 %v502
    %1218 = vmatpush.msra.mxu0 %v501
    %1219 = vmatpush.msra.mxu0 %v500
    %1220 = vmatpush.msra.mxu0 %v499
    %1221 = vmatpush.msra.mxu0 %v498
    %1222 = vmatpush.msra.mxu0 %v497
    %1223 = vmatpush.msra.mxu0 %v496
    %1224 = vmatpush.msra.mxu0 %v495
    %1225 = vmatpush.msra.mxu0 %v494
    %1226 = vmatpush.msra.mxu0 %v493
    %1227 = vmatpush.msra.mxu0 %v492
    %1228 = vmatmul.f32.gmra.mxu0 %v49
    %v1229 = vpop.f32.mrf.mxu0
    %v1230 = vadd.f32 %v1210, %v1229
    %1231 = vdwg.mxu0
    %1232 = vmatpush.msra.mxu0 %v523
    %1233 = vmatpush.msra.mxu0 %v522
    %1234 = vmatpush.msra.mxu0 %v521
    %1235 = vmatpush.msra.mxu0 %v520
    %1236 = vmatpush.msra.mxu0 %v519
    %1237 = vmatpush.msra.mxu0 %v518
    %1238 = vmatpush.msra.mxu0 %v517
    %1239 = vmatpush.msra.mxu0 %v516
    %1240 = vmatpush.msra.mxu0 %v515
    %1241 = vmatpush.msra.mxu0 %v514
    %1242 = vmatpush.msra.mxu0 %v513
    %1243 = vmatpush.msra.mxu0 %v512
    %1244 = vmatpush.msra.mxu0 %v511
    %1245 = vmatpush.msra.mxu0 %v510
    %1246 = vmatpush.msra.mxu0 %v509
    %1247 = vmatpush.msra.mxu0 %v508
    %1248 = vmatmul.f32.gmra.mxu0 %v50
    %v1249 = vpop.f32.mrf.mxu0
    %v1250 = vadd.f32 %v1230, %v1249
    %1251 = vdwg.mxu0
    %1252 = vmatpush.msra.mxu0 %v539
    %1253 = vmatpush.msra.mxu0 %v538
    %1254 = vmatpush.msra.mxu0 %v537
    %1255 = vmatpush.msra.mxu0 %v536
    %1256 = vmatpush.msra.mxu0 %v535
    %1257 = vmatpush.msra.mxu0 %v534
    %1258 = vmatpush.msra.mxu0 %v533
    %1259 = vmatpush.msra.mxu0 %v532
    %1260 = vmatpush.msra.mxu0 %v531
    %1261 = vmatpush.msra.mxu0 %v530
    %1262 = vmatpush.msra.mxu0 %v529
    %1263 = vmatpush.msra.mxu0 %v528
    %1264 = vmatpush.msra.mxu0 %v527
    %1265 = vmatpush.msra.mxu0 %v526
    %1266 = vmatpush.msra.mxu0 %v525
    %1267 = vmatpush.msra.mxu0 %v524
    %1268 = vmatmul.f32.gmra.mxu0 %v51
    %v1269 = vpop.f32.mrf.mxu0
    %v1270 = vadd.f32 %v1250, %v1269
    %1271 = vdwg.mxu0
    %1272 = vmatpush.msra.mxu0 %v555
    %1273 = vmatpush.msra.mxu0 %v554
    %1274 = vmatpush.msra.mxu0 %v553
    %1275 = vmatpush.msra.mxu0 %v552
    %1276 = vmatpush.msra.mxu0 %v551
    %1277 = vmatpush.msra.mxu0 %v550
    %1278 = vmatpush.msra.mxu0 %v549
    %1279 = vmatpush.msra.mxu0 %v548
    %1280 = vmatpush.msra.mxu0 %v547
    %1281 = vmatpush.msra.mxu0 %v546
    %1282 = vmatpush.msra.mxu0 %v545
    %1283 = vmatpush.msra.mxu0 %v544
    %1284 = vmatpush.msra.mxu0 %v543
    %1285 = vmatpush.msra.mxu0 %v542
    %1286 = vmatpush.msra.mxu0 %v541
    %1287 = vmatpush.msra.mxu0 %v540
    %1288 = vmatmul.f32.gmra.mxu0 %v52
    %v1289 = vpop.f32.mrf.mxu0
    %v1290 = vadd.f32 %v1270, %v1289
    %1291 = vdwg.mxu0
    %1292 = vmatpush.msra.mxu0 %v571
    %1293 = vmatpush.msra.mxu0 %v570
    %1294 = vmatpush.msra.mxu0 %v569
    %1295 = vmatpush.msra.mxu0 %v568
    %1296 = vmatpush.msra.mxu0 %v567
    %1297 = vmatpush.msra.mxu0 %v566
    %1298 = vmatpush.msra.mxu0 %v565
    %1299 = vmatpush.msra.mxu0 %v564
    %1300 = vmatpush.msra.mxu0 %v563
    %1301 = vmatpush.msra.mxu0 %v562
    %1302 = vmatpush.msra.mxu0 %v561
    %1303 = vmatpush.msra.mxu0 %v560
    %1304 = vmatpush.msra.mxu0 %v559
    %1305 = vmatpush.msra.mxu0 %v558
    %1306 = vmatpush.msra.mxu0 %v557
    %1307 = vmatpush.msra.mxu0 %v556
    %1308 = vmatmul.f32.gmra.mxu0 %v53
    %v1309 = vpop.f32.mrf.mxu0
    %v1310 = vadd.f32 %v1290, %v1309
    %1311 = vdwg.mxu0
    %1312 = vmatpush.msra.mxu0 %v587
    %1313 = vmatpush.msra.mxu0 %v586
    %1314 = vmatpush.msra.mxu0 %v585
    %1315 = vmatpush.msra.mxu0 %v584
    %1316 = vmatpush.msra.mxu0 %v583
    %1317 = vmatpush.msra.mxu0 %v582
    %1318 = vmatpush.msra.mxu0 %v581
    %1319 = vmatpush.msra.mxu0 %v580
    %1320 = vmatpush.msra.mxu0 %v579
    %1321 = vmatpush.msra.mxu0 %v578
    %1322 = vmatpush.msra.mxu0 %v577
    %1323 = vmatpush.msra.mxu0 %v576
    %1324 = vmatpush.msra.mxu0 %v575
    %1325 = vmatpush.msra.mxu0 %v574
    %1326 = vmatpush.msra.mxu0 %v573
    %1327 = vmatpush.msra.mxu0 %v572
    %1328 = vmatmul.f32.gmra.mxu0 %v54
    %v1329 = vpop.f32.mrf.mxu0
    %v1330 = vadd.f32 %v1310, %v1329
    %1331 = vdwg.mxu0
    %1332 = vmatpush.msra.mxu0 %v603
    %1333 = vmatpush.msra.mxu0 %v602
    %1334 = vmatpush.msra.mxu0 %v601
    %1335 = vmatpush.msra.mxu0 %v600
    %1336 = vmatpush.msra.mxu0 %v599
    %1337 = vmatpush.msra.mxu0 %v598
    %1338 = vmatpush.msra.mxu0 %v597
    %1339 = vmatpush.msra.mxu0 %v596
    %1340 = vmatpush.msra.mxu0 %v595
    %1341 = vmatpush.msra.mxu0 %v594
    %1342 = vmatpush.msra.mxu0 %v593
    %1343 = vmatpush.msra.mxu0 %v592
    %1344 = vmatpush.msra.mxu0 %v591
    %1345 = vmatpush.msra.mxu0 %v590
    %1346 = vmatpush.msra.mxu0 %v589
    %1347 = vmatpush.msra.mxu0 %v588
    %1348 = vmatmul.f32.gmra.mxu0 %v55
    %v1349 = vpop.f32.mrf.mxu0
    %v1350 = vadd.f32 %v1330, %v1349
    %1351 = vdwg.mxu0
    %1352 = vmatpush.msra.mxu0 %v619
    %1353 = vmatpush.msra.mxu0 %v618
    %1354 = vmatpush.msra.mxu0 %v617
    %1355 = vmatpush.msra.mxu0 %v616
    %1356 = vmatpush.msra.mxu0 %v615
    %1357 = vmatpush.msra.mxu0 %v614
    %1358 = vmatpush.msra.mxu0 %v613
    %1359 = vmatpush.msra.mxu0 %v612
    %1360 = vmatpush.msra.mxu0 %v611
    %1361 = vmatpush.msra.mxu0 %v610
    %1362 = vmatpush.msra.mxu0 %v609
    %1363 = vmatpush.msra.mxu0 %v608
    %1364 = vmatpush.msra.mxu0 %v607
    %1365 = vmatpush.msra.mxu0 %v606
    %1366 = vmatpush.msra.mxu0 %v605
    %1367 = vmatpush.msra.mxu0 %v604
    %1368 = vmatmul.f32.gmra.mxu0 %v56
    %v1369 = vpop.f32.mrf.mxu0
    %v1370 = vadd.f32 %v1350, %v1369
    %1371 = vdwg.mxu0
    %1372 = vmatpush.msra.mxu0 %v635
    %1373 = vmatpush.msra.mxu0 %v634
    %1374 = vmatpush.msra.mxu0 %v633
    %1375 = vmatpush.msra.mxu0 %v632
    %1376 = vmatpush.msra.mxu0 %v631
    %1377 = vmatpush.msra.mxu0 %v630
    %1378 = vmatpush.msra.mxu0 %v629
    %1379 = vmatpush.msra.mxu0 %v628
    %1380 = vmatpush.msra.mxu0 %v627
    %1381 = vmatpush.msra.mxu0 %v626
    %1382 = vmatpush.msra.mxu0 %v625
    %1383 = vmatpush.msra.mxu0 %v624
    %1384 = vmatpush.msra.mxu0 %v623
    %1385 = vmatpush.msra.mxu0 %v622
    %1386 = vmatpush.msra.mxu0 %v621
    %1387 = vmatpush.msra.mxu0 %v620
    %1388 = vmatmul.f32.gmra.mxu0 %v57
    %v1389 = vpop.f32.mrf.mxu0
    %v1390 = vadd.f32 %v1370, %v1389
    %1391 = vdwg.mxu0
    %1392 = vmatpush.msra.mxu0 %v651
    %1393 = vmatpush.msra.mxu0 %v650
    %1394 = vmatpush.msra.mxu0 %v649
    %1395 = vmatpush.msra.mxu0 %v648
    %1396 = vmatpush.msra.mxu0 %v647
    %1397 = vmatpush.msra.mxu0 %v646
    %1398 = vmatpush.msra.mxu0 %v645
    %1399 = vmatpush.msra.mxu0 %v644
    %1400 = vmatpush.msra.mxu0 %v643
    %1401 = vmatpush.msra.mxu0 %v642
    %1402 = vmatpush.msra.mxu0 %v641
    %1403 = vmatpush.msra.mxu0 %v640
    %1404 = vmatpush.msra.mxu0 %v639
    %1405 = vmatpush.msra.mxu0 %v638
    %1406 = vmatpush.msra.mxu0 %v637
    %1407 = vmatpush.msra.mxu0 %v636
    %1408 = vmatmul.f32.gmra.mxu0 %v58
    %v1409 = vpop.f32.mrf.mxu0
    %v1410 = vadd.f32 %v1390, %v1409
    %1411 = vdwg.mxu0
    %1412 = vmatpush.msra.mxu0 %v667
    %1413 = vmatpush.msra.mxu0 %v666
    %1414 = vmatpush.msra.mxu0 %v665
    %1415 = vmatpush.msra.mxu0 %v664
    %1416 = vmatpush.msra.mxu0 %v663
    %1417 = vmatpush.msra.mxu0 %v662
    %1418 = vmatpush.msra.mxu0 %v661
    %1419 = vmatpush.msra.mxu0 %v660
    %1420 = vmatpush.msra.mxu0 %v659
    %1421 = vmatpush.msra.mxu0 %v658
    %1422 = vmatpush.msra.mxu0 %v657
    %1423 = vmatpush.msra.mxu0 %v656
    %1424 = vmatpush.msra.mxu0 %v655
    %1425 = vmatpush.msra.mxu0 %v654
    %1426 = vmatpush.msra.mxu0 %v653
    %1427 = vmatpush.msra.mxu0 %v652
    %1428 = vmatmul.f32.gmra.mxu0 %v59
    %v1429 = vpop.f32.mrf.mxu0
    %v1430 = vadd.f32 %v1410, %v1429
    %1431 = vdwg.mxu0
    %vm1432 = vcmp.gt.f32.partialorder %v1430, 0.0
    %v1433 = vmul.f32 %v1430, 0.01
    %v1434 = vsel %vm1432, %v1430, %v1433
    %v1435 = vld [vmem:[%s3] sm:$0x1]
    %s1436 = sld [smem:[#allocation2]]
    %v1437 = vstv %s1436
    %1438 = vmatpush.xpose.msra.mxu0 0.0
    %1439 = vmatpush.xpose.msra.mxu0 0.0
    %1440 = vmatpush.xpose.msra.mxu0 0.0
    %1441 = vmatpush.xpose.msra.mxu0 0.0
    %1442 = vmatpush.xpose.msra.mxu0 0.0
    %1443 = vmatpush.xpose.msra.mxu0 0.0
    %1444 = vmatpush.xpose.msra.mxu0 0.0
    %1445 = vmatpush.xpose.msra.mxu0 0.0
    %1446 = vmatpush.xpose.msra.mxu0 0.0
    %1447 = vmatpush.xpose.msra.mxu0 0.0
    %1448 = vmatpush.xpose.msra.mxu0 0.0
    %1449 = vmatpush.xpose.msra.mxu0 0.0
    %1450 = vmatpush.xpose.msra.mxu0 0.0
    %1451 = vmatpush.xpose.msra.mxu0 0.0
    %1452 = vmatpush.xpose.msra.mxu0 0.0
    %1453 = vmatpush.xpose.msra.mxu0 %v1434
    %1454 = vmatmul.f32.gmra.mxu0 %v1435
    %v1455 = vpop.f32.mrf.mxu0
    %v1456 = vadd.f32 %v1437, %v1455
    %1457 = vdwg.mxu0
    %v1458 = vmax.f32 %v1456, 0.0
    %v1459 = vand.u32 2147483647, %v1456
    %v1460 = vsub.f32 0.0, %v1459
    %v1461 = vmul.f32 %v1460, 1.442695
    %v1462 = vpow.pop %v1461
    %v1463 = vadd.f32 %v1462, 1.0
    %v1464 = vlog2.pop %v1463
    %v1465 = vmul.f32 %v1464, 0.6931472
    %v1466 = vmul.f32 -0.5, %v1462
    %v1467 = vadd.f32 %v1466, 1.0
    %v1468 = vmul.f32 %v1467, %v1462
    %v1469 = vand.u32 2147483647, %v1462
    %vm1470 = vcmp.lt.f32.partialorder %v1469, 0.0004427343
    %v1471 = vsel %vm1470, %v1468, %v1465
    %v1472 = vadd.f32 %v1458, %v1471
    %v1473 = vlaneseq
    %v1474 = vshrl.u32 %v1473, 7
    %vm1475 = vcmp.eq.s32.totalorder %v1474, 0
    %v1476 = vsub.f32 %v1456, %v1472
    %v1477 = vsub.f32 0.0, %v1472
    %v1478 = vperm.slane %v1476, 0
    %v1479 = vperm.slane %v1477, 0
    %v1480 = vsel %vm1475, %v1478, %v1479
    %vm1481 = vcmask 58368
    %1482 = vst.msk [vmem:[#allocation3] sm:$0x3] %vm1481, %v1480
    // Predicated region
    $region22: #{densenet_head_forward.1} parent=1 // pred_check
      _
    $region23: #{densenet_head_forward.1} parent=1 // pred_check_branch
      %1484 = sbr.rel (0) target = $region25
    $region24: #{densenet_head_forward.1} parent=1 // pred_region
      %1486 = vsyncadd [#allocation4], 0
      %s1488 = sshll.u32 [#allocation3], 4
      %s1489 = int_to_ptr.vmem [resolvable:$true] %s1488
      %s1490 = sshll.u32 %s5, 4
      %s1491 = int_to_ptr.hbm [resolvable:$true] %s1490
      %1493 = dma.vmem_to_hbm [thread:$0]  %s1489, 32, %s1491, [#allocation4]
    $region25: #{densenet_head_forward.1} parent=1 // pred_fallthru
      _
    // Predicated region
    $region26: #{densenet_head_forward.1} parent=1 // pred_check
      _
    $region27: #{densenet_head_forward.1} parent=1 // pred_check_branch
      %1495 = sbr.rel (0) target = $region29
    $region28: #{densenet_head_forward.1} parent=1 // pred_region
      %1497 = dma.done [#allocation4], 32
    $region29: #{densenet_head_forward.1} parent=1 // pred_fallthru
      _
    %1498 = vsyncpa [#allocation4], 1

</llo_original>
